<compile_context>
chip_gen: v7x
topology: tpu7x:2x2x1
jax: 0.10.0
libtpu: 0.0.40
codegen_flags: <defaults>
</compile_context>

<pallas_src>
import functools
import math

import numpy as np

import jax
import jax.numpy as jnp
from jax.experimental import pallas as pl
from jax.experimental.pallas import tpu as pltpu

LN_EPS = 1e-5  # PyTorch LayerNorm default eps


# ----------------------------- in-kernel math ------------------------------

def _erf_approx(x, fast_recip):
    # Abramowitz & Stegun 7.1.26 polynomial (|err| < 1.5e-7); matches
    # torch nn.GELU() (approximate='none') well within test tolerance.
    p = 0.3275911
    a1, a2, a3, a4, a5 = (0.254829592, -0.284496736, 1.421413741,
                          -1.453152027, 1.061405429)
    sgn = jnp.where(x >= 0.0, 1.0, -1.0)
    ax = jnp.abs(x)
    den = 1.0 + p * ax
    # EUP approximate reciprocal keeps the divide off the VALU critical path;
    # one Newton step on the strict f32 path restores full f32 accuracy.
    t = pl.reciprocal(den, approx=True)
    if not fast_recip:
        t = t * (2.0 - den * t)
    poly = t * (a1 + t * (a2 + t * (a3 + t * (a4 + t * a5))))
    return sgn * (1.0 - poly * jnp.exp(-ax * ax))


def _gelu_exact(x, fast_recip):
    return 0.5 * x * (1.0 + _erf_approx(x * (1.0 / math.sqrt(2.0)), fast_recip))


def _layernorm(y, w, b):
    # One-pass variance (E[x^2] - mu^2): one fewer elementwise pass and the two
    # cross-lane reductions are independent.  Clamp guards f32 cancellation.
    mu = jnp.mean(y, axis=-1, keepdims=True)
    ms = jnp.mean(y * y, axis=-1, keepdims=True)
    var = jnp.maximum(ms - mu * mu, 0.0)
    return (y - mu) * jax.lax.rsqrt(var + LN_EPS) * w + b


def _circ_roll(v, shift, mode):
    """Circular roll of rows: out[i] = v[(i - shift) % n]  (jnp.roll convention)."""
    n = v.shape[0]
    shift = shift % n
    if shift == 0:
        return v
    if mode == 0:
        # Fallback if pltpu.roll is unavailable (slower: sublane slice+concat).
        return jnp.concatenate([v[n - shift:], v[:n - shift]], axis=0)
    s = shift if mode > 0 else (n - shift) % n
    return pltpu.roll(v, s, axis=0)


@functools.lru_cache(maxsize=None)
def _roll_mode():
    """Resolve the hardware rotate convention once per process.

    Mosaic's rotate is expected to match jnp.roll; this one-off 8x128 probe
    makes the conv-tap shifts robust to a convention change (1: matches
    jnp.roll, -1: flipped, 0: pltpu.roll unusable -> slice+concat fallback).
    """
    def k(x_ref, o_ref):
        o_ref[...] = pltpu.roll(x_ref[...], 1, axis=0)

    try:
        x = jnp.arange(8 * 128, dtype=jnp.float32).reshape(8, 128)
        out = pl.pallas_call(
            k, out_shape=jax.ShapeDtypeStruct((8, 128), jnp.float32))(x)
        if bool(jnp.all(out == jnp.roll(x, 1, axis=0))):
            return 1
        if bool(jnp.all(out == jnp.roll(x, -1, axis=0))):
            return -1
    except Exception:
        pass
    return 0


def _vmem_capacity_bytes():
    try:
        info = pltpu.get_tpu_info()
        for name in ("vmem_capacity_bytes", "vmem_size_bytes", "vmem_bytes"):
            v = getattr(info, name, None)
            if v:
                return int(v)
    except Exception:
        pass
    return 64 * 1024 * 1024  # conservative: v7x per-TensorCore VMEM


# --------------------------------- kernel ----------------------------------

def c2f_kernel(x_ref, cw_ref, cb_ref, nhw_ref, nhb_ref,
               lwx_ref, lwc_ref, lb_ref, nw_ref, nb_ref, o_ref,
               *, cov_num, compute_dtype, fast_recip, roll_mode):
    TB, L, D = x_ref.shape
    C = D // 2
    M = TB * L
    cdt = compute_dtype

    # --- parameter loads hoisted out of all loops (JAX does not CSE these) ---
    cw = [[cw_ref[n, k] for k in range(3)] for n in range(cov_num)]   # (C, C)
    cb = [cb_ref[n] for n in range(cov_num)]                          # (1, C)
    nh_w = nhw_ref[...]          # (1, C): implicit sublane broadcast in the LN
    nh_b = nhb_ref[...]
    lwx = lwx_ref[...]           # (D, D) compute dtype
    lwc = lwc_ref[...]           # (C, D) compute dtype
    lb = lb_ref[...]             # (1, D) f32
    n_w = nw_ref[...]            # (1, D)
    n_b = nb_ref[...]

    # --- fold the batch block into the matmul M dimension (M = TB*L rows) ---
    # All value manipulation (reshape / slice / roll / select) is done in f32;
    # the compute dtype (bf16 on the fast path) is used only for MXU operands.
    if TB == 1:
        xf = x_ref[0].astype(jnp.float32)                    # (L, D)
    else:
        # TODO(synk): for L not a multiple of 8 this reshape forces a relayout;
        # pad the sequence to the sublane tile in production.
        xf = x_ref[...].astype(jnp.float32).reshape(M, D)    # (TB*L, D)
    covx = xf[:, C:]                                         # px, (M, C) f32

    if TB > 1:
        row = jax.lax.broadcasted_iota(jnp.int32, (M, 1), 0)
        is_first = (row % L) == 0
        is_last = (row % L) == (L - 1)

    def from_prev(v):        # out[t, l] = v[t, (l - 1) % L]
        r = _circ_roll(v, 1, roll_mode)
        if TB == 1:
            return r
        return jnp.where(is_first, _circ_roll(v, M - (L - 1), roll_mode), r)

    def from_next(v):        # out[t, l] = v[t, (l + 1) % L]
        r = _circ_roll(v, M - 1, roll_mode)
        if TB == 1:
            return r
        return jnp.where(is_last, _circ_roll(v, L - 1, roll_mode), r)

    for n in range(cov_num):
        w0, w1, w2 = cw[n]
        cx = covx.astype(cdt)
        # circular Conv1d(k=3, stride=1, pad=1, padding_mode='circular'):
        #   y[l] = x[l-1] @ W0 + x[l] @ W1 + x[l+1] @ W2
        # The shifted taps come from rolling the f32 matmul *outputs* along the
        # flattened sequence axis (XLU slot), so only the unshifted covx is
        # cast / pushed to the MXU and no (M, 3C) concat is materialized.
        a0 = jnp.dot(cx, w0, preferred_element_type=jnp.float32)
        a1 = jnp.dot(cx, w1, preferred_element_type=jnp.float32)
        a2 = jnp.dot(cx, w2, preferred_element_type=jnp.float32)
        y = from_prev(a0) + a1 + from_next(a2) + cb[n]
        covx = _gelu_exact(_layernorm(y, nh_w, nh_b), fast_recip)

    # final Linear([ox, px, covx]) == x @ Wx + covx @ Wc   (no (M, D+C) concat)
    z = (jnp.dot(xf.astype(cdt), lwx, preferred_element_type=jnp.float32)
         + jnp.dot(covx.astype(cdt), lwc, preferred_element_type=jnp.float32)
         + lb)
    out = _gelu_exact(_layernorm(z, n_w, n_b), fast_recip)
    if TB == 1:
        o_ref[0] = out.astype(o_ref.dtype)
    else:
        o_ref[...] = out.reshape(TB, L, D).astype(o_ref.dtype)


# ------------------------------ host wrapper --------------------------------

def c2f_block_forward(x, params, *, cov_num, d_model,
                      compute_dtype=jnp.float32, batch_block=None,
                      fast_gelu_recip=None):
    B, L, D = x.shape
    assert D == d_model and D % 2 == 0
    C = D // 2
    cdt = np.dtype(compute_dtype)
    if fast_gelu_recip is None:
        # Gate the GELU fast-reciprocal separately from the matmul dtype so the
        # bf16 path's extra deviation from exact erf-GELU is explicit.
        fast_gelu_recip = cdt != np.dtype(np.float32)

    # bf16 activation I/O on the bf16 compute path: halves HBM<->VMEM DMA and
    # the per-step block footprint.  LN/GELU math stays f32 inside the kernel.
    io_dtype = jnp.bfloat16 if cdt == np.dtype(jnp.bfloat16) else x.dtype
    x_in = x.astype(io_dtype)
    io_bytes = np.dtype(io_dtype).itemsize

    # conv weights: torch layout (cov_num, Cout, Cin, K=3) -> (cov_num, 3, Cin, Cout)
    # so tap k is a plain (Cin, Cout) matmul weight.
    cw = jnp.transpose(params["conv_w"], (0, 3, 2, 1)).astype(cdt)
    cb = params["conv_b"].reshape(cov_num, 1, C).astype(jnp.float32)
    nhw = params["nh_w"].reshape(1, C).astype(jnp.float32)
    nhb = params["nh_b"].reshape(1, C).astype(jnp.float32)
    # final Linear: split the (D+C, D) weight into x-part and covx-part.
    lw_t = params["lin_w"].T                      # (D + C, D)
    lwx = lw_t[:D].astype(cdt)                    # (D, D)
    lwc = lw_t[D:].astype(cdt)                    # (C, D)
    lb = params["lin_b"].reshape(1, D).astype(jnp.float32)
    nw = params["n_w"].reshape(1, D).astype(jnp.float32)
    nb = params["n_b"].reshape(1, D).astype(jnp.float32)
    weights = (cw, cb, nhw, nhb, lwx, lwc, lb, nw, nb)
    weight_bytes = sum(int(a.size) * a.dtype.itemsize for a in weights)

    # Generation-aware VMEM budget: in/out blocks are double-buffered by the
    # pipeline; weights are constant-index blocks; intermediates are f32.
    vmem_cap = _vmem_capacity_bytes()

    def footprint(tb):
        m = tb * L
        blocks = 2 * 2 * tb * L * D * io_bytes          # x + out, double-buffered
        consts = 2 * weight_bytes                       # constant-index blocks
        inter = m * (10 * C + 4 * D) * 4                # live f32 intermediates
        return blocks + consts + inter

    if batch_block is None:
        budget = (vmem_cap * 3) // 4
        divisors = [d for d in range(1, B + 1) if B % d == 0]
        fits = [d for d in divisors if footprint(d) <= budget] or [1]
        # v7x has 2 TensorCores: prefer an even grid length so
        # dimension_semantics=("parallel",) shards the steps evenly.
        even = [d for d in fits if (B // d) % 2 == 0]
        tb = max(even) if even else max(fits)
    else:
        tb = int(batch_block)
    assert B % tb == 0, (B, tb)

    vmem_limit = int(max(min(max(2 * footprint(tb), 32 * 1024 * 1024),
                             vmem_cap - 8 * 1024 * 1024),
                         16 * 1024 * 1024))

    kernel = functools.partial(c2f_kernel, cov_num=cov_num, compute_dtype=cdt,
                               fast_recip=bool(fast_gelu_recip),
                               roll_mode=_roll_mode())

    def full_spec(a):
        nd = a.ndim
        return pl.BlockSpec(a.shape, lambda b, _nd=nd: (0,) * _nd)

    flops = 2 * B * L * (cov_num * 3 * C * C + (D + C) * D)
    transcendentals = B * L * (cov_num * C + D)
    bytes_accessed = int(2 * B * L * D * io_bytes + weight_bytes)

    return pl.pallas_call(
        kernel,
        out_shape=jax.ShapeDtypeStruct((B, L, D), io_dtype),
        grid=(B // tb,),
        in_specs=[pl.BlockSpec((tb, L, D), lambda b: (b, 0, 0))]
                 + [full_spec(a) for a in weights],
        out_specs=pl.BlockSpec((tb, L, D), lambda b: (b, 0, 0)),
        compiler_params=pltpu.CompilerParams(
            dimension_semantics=("parallel",),
            vmem_limit_bytes=vmem_limit),
        cost_estimate=pl.CostEstimate(flops=int(flops),
                                      transcendentals=int(transcendentals),
                                      bytes_accessed=bytes_accessed),
    )(x_in, *weights)


# ------------------------- params + pure-JAX reference ----------------------

def init_params(key, cov_num, d_model):
    C = d_model // 2
    ks = jax.random.split(key, 8)
    return dict(
        conv_w=0.2 * jax.random.normal(ks[0], (cov_num, C, C, 3), jnp.float32),
        conv_b=0.1 * jax.random.normal(ks[1], (cov_num, C), jnp.float32),
        nh_w=1.0 + 0.1 * jax.random.normal(ks[2], (C,), jnp.float32),
        nh_b=0.1 * jax.random.normal(ks[3], (C,), jnp.float32),
        lin_w=0.2 * jax.random.normal(ks[4], (d_model, d_model + C), jnp.float32),
        lin_b=0.1 * jax.random.normal(ks[5], (d_model,), jnp.float32),
        n_w=1.0 + 0.1 * jax.random.normal(ks[6], (d_model,), jnp.float32),
        n_b=0.1 * jax.random.normal(ks[7], (d_model,), jnp.float32),
    )


def c2f_reference(x, params, *, cov_num, d_model):
    C = d_model // 2
    ox, px = x[..., :C], x[..., C:]

    def ln(v, w, b):
        mu = jnp.mean(v, axis=-1, keepdims=True)
        var = jnp.mean(jnp.square(v - mu), axis=-1, keepdims=True)
        return (v - mu) / jnp.sqrt(var + LN_EPS) * w + b

    gelu = lambda v: jax.nn.gelu(v, approximate=False)

    covx = px
    for n in range(cov_num):
        w = params["conv_w"][n]        # (Cout, Cin, 3)
        y = (jnp.einsum("blc,oc->blo", jnp.roll(covx, 1, axis=1), w[:, :, 0])
             + jnp.einsum("blc,oc->blo", covx, w[:, :, 1])
             + jnp.einsum("blc,oc->blo", jnp.roll(covx, -1, axis=1), w[:, :, 2])
             + params["conv_b"][n])
        covx = gelu(ln(y, params["nh_w"], params["nh_b"]))
    cat = jnp.concatenate([ox, px, covx], axis=-1)
    z = cat @ params["lin_w"].T + params["lin_b"]
    return gelu(ln(z, params["n_w"], params["n_b"]))


if __name__ == "__main__":
    cov_num, d_model = 2, 16
    B, L = 2, 8

    key = jax.random.PRNGKey(0)
    kx, kp = jax.random.split(key)
    x = jax.random.normal(kx, (B, L, d_model), jnp.float32)
    params = init_params(kp, cov_num, d_model)

    ref = c2f_reference(x, params, cov_num=cov_num, d_model=d_model)

    # strict f32 path (default TB heuristic -> TB=1, grid of 2 pipelined steps)
    out = c2f_block_forward(x, params, cov_num=cov_num, d_model=d_model)
    out = jax.block_until_ready(out)
    assert out.shape == (B, L, d_model)
    assert jnp.allclose(out, ref, rtol=1e-3, atol=1e-3), \
        float(jnp.max(jnp.abs(out - ref)))

    # bf16 activation I/O + bf16 MXU inputs, batch folded into the matmul M
    # dimension (TB=2 -> M=16 rows per dot).
    out_bf16 = c2f_block_forward(x, params, cov_num=cov_num, d_model=d_model,
                                 compute_dtype=jnp.bfloat16, batch_block=2)
    out_bf16 = jax.block_until_ready(out_bf16)
    assert out_bf16.shape == (B, L, d_model)
    err16 = float(jnp.max(jnp.abs(out_bf16.astype(jnp.float32) - ref)))
    assert err16 < 0.1, err16

    print("KERNEL_OK")
</pallas_src>

<mosaic_0001>
module attributes {stable_mosaic.version = 11 : i64} {
  func.func @k(%arg0: memref<8x128xf32, #tpu.memory_space<vmem>>, %arg1: memref<8x128xf32, #tpu.memory_space<vmem>>) attributes {dimension_semantics = [], scalar_prefetch = 0 : i64, scratch_operands = 0 : i64, tpu.core_type = #tpu.core_type<tc>} {
    %c0 = arith.constant 0 : index
    %c0_0 = arith.constant 0 : index
    %0 = vector.load %arg0[%c0, %c0_0] : memref<8x128xf32, #tpu.memory_space<vmem>>, vector<8x128xf32>
    %c1_i32 = arith.constant 1 : i32
    %1 = tpu.dynamic_rotate %0 by %c1_i32 dim 0 : vector<8x128xf32>, i32 -> vector<8x128xf32>
    %c0_1 = arith.constant 0 : index
    %c0_2 = arith.constant 0 : index
    %2 = vector.load %arg1[%c0_1, %c0_2] : memref<8x128xf32, #tpu.memory_space<vmem>>, vector<8x128xf32>
    tpu.vector_store %arg1[%c0_1, %c0_2], %1 {strides = array<i32>} : memref<8x128xf32, #tpu.memory_space<vmem>>, vector<8x128xf32>,
    return
  }
}

module attributes {stable_mosaic.version = 11 : i64} {
  func.func @c2f_kernel(%arg0: i32, %arg1: memref<1x8x16xf32, #tpu.memory_space<vmem>>, %arg2: memref<2x3x8x8xf32, #tpu.memory_space<vmem>>, %arg3: memref<2x1x8xf32, #tpu.memory_space<vmem>>, %arg4: memref<1x8xf32, #tpu.memory_space<vmem>>, %arg5: memref<1x8xf32, #tpu.memory_space<vmem>>, %arg6: memref<16x16xf32, #tpu.memory_space<vmem>>, %arg7: memref<8x16xf32, #tpu.memory_space<vmem>>, %arg8: memref<1x16xf32, #tpu.memory_space<vmem>>, %arg9: memref<1x16xf32, #tpu.memory_space<vmem>>, %arg10: memref<1x16xf32, #tpu.memory_space<vmem>>, %arg11: memref<1x8x16xf32, #tpu.memory_space<vmem>>) attributes {dimension_semantics = [#tpu.dimension_semantics<parallel>], iteration_bounds = array<i64: 2>, scalar_prefetch = 0 : i64, scratch_operands = 0 : i64, tpu.core_type = #tpu.core_type<tc>, window_params = [{transform_indices = @transform_0, window_bounds = array<i64: 1, 8, 16>}, {pipeline_mode = #tpu.pipeline_mode<synchronous>, transform_indices = @transform_1, window_bounds = array<i64: 2, 3, 8, 8>}, {pipeline_mode = #tpu.pipeline_mode<synchronous>, transform_indices = @transform_2, window_bounds = array<i64: 2, 1, 8>}, {pipeline_mode = #tpu.pipeline_mode<synchronous>, transform_indices = @transform_3, window_bounds = array<i64: 1, 8>}, {pipeline_mode = #tpu.pipeline_mode<synchronous>, transform_indices = @transform_4, window_bounds = array<i64: 1, 8>}, {pipeline_mode = #tpu.pipeline_mode<synchronous>, transform_indices = @transform_5, window_bounds = array<i64: 16, 16>}, {pipeline_mode = #tpu.pipeline_mode<synchronous>, transform_indices = @transform_6, window_bounds = array<i64: 8, 16>}, {pipeline_mode = #tpu.pipeline_mode<synchronous>, transform_indices = @transform_7, window_bounds = array<i64: 1, 16>}, {pipeline_mode = #tpu.pipeline_mode<synchronous>, transform_indices = @transform_8, window_bounds = array<i64: 1, 16>}, {pipeline_mode = #tpu.pipeline_mode<synchronous>, transform_indices = @transform_9, window_bounds = array<i64: 1, 16>}, {transform_indices = @transform_10, window_bounds = array<i64: 1, 8, 16>}]} {
    %c0 = arith.constant 0 : index
    %c0_0 = arith.constant 0 : index
    %c0_1 = arith.constant 0 : index
    %c0_2 = arith.constant 0 : index
    %0 = vector.load %arg2[%c0, %c0_0, %c0_1, %c0_2] : memref<2x3x8x8xf32, #tpu.memory_space<vmem>>, vector<1x1x8x8xf32>
    %1 = vector.shape_cast %0 : vector<1x1x8x8xf32> to vector<8x8xf32>
    %c0_3 = arith.constant 0 : index
    %c1 = arith.constant 1 : index
    %c0_4 = arith.constant 0 : index
    %c0_5 = arith.constant 0 : index
    %2 = vector.load %arg2[%c0_3, %c1, %c0_4, %c0_5] : memref<2x3x8x8xf32, #tpu.memory_space<vmem>>, vector<1x1x8x8xf32>
    %3 = vector.shape_cast %2 : vector<1x1x8x8xf32> to vector<8x8xf32>
    %c0_6 = arith.constant 0 : index
    %c2 = arith.constant 2 : index
    %c0_7 = arith.constant 0 : index
    %c0_8 = arith.constant 0 : index
    %4 = vector.load %arg2[%c0_6, %c2, %c0_7, %c0_8] : memref<2x3x8x8xf32, #tpu.memory_space<vmem>>, vector<1x1x8x8xf32>
    %5 = vector.shape_cast %4 : vector<1x1x8x8xf32> to vector<8x8xf32>
    %c1_9 = arith.constant 1 : index
    %c0_10 = arith.constant 0 : index
    %c0_11 = arith.constant 0 : index
    %c0_12 = arith.constant 0 : index
    %6 = vector.load %arg2[%c1_9, %c0_10, %c0_11, %c0_12] : memref<2x3x8x8xf32, #tpu.memory_space<vmem>>, vector<1x1x8x8xf32>
    %7 = vector.shape_cast %6 : vector<1x1x8x8xf32> to vector<8x8xf32>
    %c1_13 = arith.constant 1 : index
    %c1_14 = arith.constant 1 : index
    %c0_15 = arith.constant 0 : index
    %c0_16 = arith.constant 0 : index
    %8 = vector.load %arg2[%c1_13, %c1_14, %c0_15, %c0_16] : memref<2x3x8x8xf32, #tpu.memory_space<vmem>>, vector<1x1x8x8xf32>
    %9 = vector.shape_cast %8 : vector<1x1x8x8xf32> to vector<8x8xf32>
    %c1_17 = arith.constant 1 : index
    %c2_18 = arith.constant 2 : index
    %c0_19 = arith.constant 0 : index
    %c0_20 = arith.constant 0 : index
    %10 = vector.load %arg2[%c1_17, %c2_18, %c0_19, %c0_20] : memref<2x3x8x8xf32, #tpu.memory_space<vmem>>, vector<1x1x8x8xf32>
    %11 = vector.shape_cast %10 : vector<1x1x8x8xf32> to vector<8x8xf32>
    %c0_21 = arith.constant 0 : index
    %c0_22 = arith.constant 0 : index
    %c0_23 = arith.constant 0 : index
    %12 = vector.load %arg3[%c0_21, %c0_22, %c0_23] : memref<2x1x8xf32, #tpu.memory_space<vmem>>, vector<1x1x8xf32>
    %13 = vector.shape_cast %12 : vector<1x1x8xf32> to vector<1x8xf32>
    %c1_24 = arith.constant 1 : index
    %c0_25 = arith.constant 0 : index
    %c0_26 = arith.constant 0 : index
    %14 = vector.load %arg3[%c1_24, %c0_25, %c0_26] : memref<2x1x8xf32, #tpu.memory_space<vmem>>, vector<1x1x8xf32>
    %15 = vector.shape_cast %14 : vector<1x1x8xf32> to vector<1x8xf32>
    %c0_27 = arith.constant 0 : index
    %c0_28 = arith.constant 0 : index
    %16 = vector.load %arg4[%c0_27, %c0_28] : memref<1x8xf32, #tpu.memory_space<vmem>>, vector<1x8xf32>
    %c0_29 = arith.constant 0 : index
    %c0_30 = arith.constant 0 : index
    %17 = vector.load %arg5[%c0_29, %c0_30] : memref<1x8xf32, #tpu.memory_space<vmem>>, vector<1x8xf32>
    %c0_31 = arith.constant 0 : index
    %c0_32 = arith.constant 0 : index
    %18 = vector.load %arg6[%c0_31, %c0_32] : memref<16x16xf32, #tpu.memory_space<vmem>>, vector<16x16xf32>
    %c0_33 = arith.constant 0 : index
    %c0_34 = arith.constant 0 : index
    %19 = vector.load %arg7[%c0_33, %c0_34] : memref<8x16xf32, #tpu.memory_space<vmem>>, vector<8x16xf32>
    %c0_35 = arith.constant 0 : index
    %c0_36 = arith.constant 0 : index
    %20 = vector.load %arg8[%c0_35, %c0_36] : memref<1x16xf32, #tpu.memory_space<vmem>>, vector<1x16xf32>
    %c0_37 = arith.constant 0 : index
    %c0_38 = arith.constant 0 : index
    %21 = vector.load %arg9[%c0_37, %c0_38] : memref<1x16xf32, #tpu.memory_space<vmem>>, vector<1x16xf32>
    %c0_39 = arith.constant 0 : index
    %c0_40 = arith.constant 0 : index
    %22 = vector.load %arg10[%c0_39, %c0_40] : memref<1x16xf32, #tpu.memory_space<vmem>>, vector<1x16xf32>
    %c0_41 = arith.constant 0 : index
    %c0_42 = arith.constant 0 : index
    %c0_43 = arith.constant 0 : index
    %23 = vector.load %arg1[%c0_41, %c0_42, %c0_43] : memref<1x8x16xf32, #tpu.memory_space<vmem>>, vector<1x8x16xf32>
    %24 = vector.shape_cast %23 : vector<1x8x16xf32> to vector<8x16xf32>
    %25 = vector.extract_strided_slice %24 {offsets = [0, 8], sizes = [8, 8], strides = [1, 1]} : vector<8x16xf32> to vector<8x8xf32>
    %cst = arith.constant dense<0.000000e+00> : vector<8x8xf32>
    %26 = tpu.matmul %25, %1, %cst {dimension_numbers = #tpu.dot_dimension_numbers<[1], [0], [0], [1], [0, 0, 1, 1], [], []>} : vector<8x8xf32>, vector<8x8xf32>, vector<8x8xf32> -> vector<8x8xf32>
    %cst_44 = arith.constant dense<0.000000e+00> : vector<8x8xf32>
    %27 = tpu.matmul %25, %3, %cst_44 {dimension_numbers = #tpu.dot_dimension_numbers<[1], [0], [0], [1], [0, 0, 1, 1], [], []>} : vector<8x8xf32>, vector<8x8xf32>, vector<8x8xf32> -> vector<8x8xf32>
    %cst_45 = arith.constant dense<0.000000e+00> : vector<8x8xf32>
    %28 = tpu.matmul %25, %5, %cst_45 {dimension_numbers = #tpu.dot_dimension_numbers<[1], [0], [0], [1], [0, 0, 1, 1], [], []>} : vector<8x8xf32>, vector<8x8xf32>, vector<8x8xf32> -> vector<8x8xf32>
    %29 = vector.extract_strided_slice %26 {offsets = [7, 0], sizes = [1, 8], strides = [1, 1]} : vector<8x8xf32> to vector<1x8xf32>
    %30 = vector.extract_strided_slice %26 {offsets = [0, 0], sizes = [7, 8], strides = [1, 1]} : vector<8x8xf32> to vector<7x8xf32>
    %31 = tpu.concatenate %29, %30 in 0 : vector<1x8xf32>, vector<7x8xf32> -> vector<8x8xf32>
    %32 = arith.addf %31, %27 : vector<8x8xf32>
    %33 = vector.extract_strided_slice %28 {offsets = [1, 0], sizes = [7, 8], strides = [1, 1]} : vector<8x8xf32> to vector<7x8xf32>
    %34 = vector.extract_strided_slice %28 {offsets = [0, 0], sizes = [1, 8], strides = [1, 1]} : vector<8x8xf32> to vector<1x8xf32>
    %35 = tpu.concatenate %33, %34 in 0 : vector<7x8xf32>, vector<1x8xf32> -> vector<8x8xf32>
    %36 = arith.addf %32, %35 : vector<8x8xf32>
    %37 = vector.broadcast %13 : vector<1x8xf32> to vector<8x8xf32>
    %38 = arith.addf %36, %37 : vector<8x8xf32>
    %cst_46 = arith.constant dense<0.000000e+00> : vector<8xf32>
    %39 = vector.multi_reduction <add>, %38, %cst_46 [1] : vector<8x8xf32> to vector<8xf32>
    %40 = vector.shape_cast %39 : vector<8xf32> to vector<8x1xf32>
    %cst_47 = arith.constant 8.000000e+00 : f32
    %41 = vector.broadcast %cst_47 : f32 to vector<8x1xf32>
    %42 = arith.divf %40, %41 : vector<8x1xf32>
    %43 = arith.mulf %38, %38 : vector<8x8xf32>
    %cst_48 = arith.constant dense<0.000000e+00> : vector<8xf32>
    %44 = vector.multi_reduction <add>, %43, %cst_48 [1] : vector<8x8xf32> to vector<8xf32>
    %45 = vector.shape_cast %44 : vector<8xf32> to vector<8x1xf32>
    %cst_49 = arith.constant 8.000000e+00 : f32
    %46 = vector.broadcast %cst_49 : f32 to vector<8x1xf32>
    %47 = arith.divf %45, %46 : vector<8x1xf32>
    %48 = arith.mulf %42, %42 : vector<8x1xf32>
    %49 = arith.subf %47, %48 : vector<8x1xf32>
    %cst_50 = arith.constant 0.000000e+00 : f32
    %50 = vector.broadcast %cst_50 : f32 to vector<8x1xf32>
    %51 = arith.maximumf %49, %50 : vector<8x1xf32>
    %52 = vector.broadcast %42 : vector<8x1xf32> to vector<8x8xf32>
    %53 = arith.subf %38, %52 : vector<8x8xf32>
    %cst_51 = arith.constant 9.99999974E-6 : f32
    %54 = vector.broadcast %cst_51 : f32 to vector<8x1xf32>
    %55 = arith.addf %51, %54 : vector<8x1xf32>
    %56 = math.rsqrt %55 : vector<8x1xf32>
    %57 = vector.broadcast %56 : vector<8x1xf32> to vector<8x8xf32>
    %58 = arith.mulf %53, %57 : vector<8x8xf32>
    %59 = vector.broadcast %16 : vector<1x8xf32> to vector<8x8xf32>
    %60 = arith.mulf %58, %59 : vector<8x8xf32>
    %61 = vector.broadcast %17 : vector<1x8xf32> to vector<8x8xf32>
    %62 = arith.addf %60, %61 : vector<8x8xf32>
    %cst_52 = arith.constant 5.000000e-01 : f32
    %63 = vector.broadcast %cst_52 : f32 to vector<8x8xf32>
    %64 = arith.mulf %63, %62 : vector<8x8xf32>
    %cst_53 = arith.constant 0.707106769 : f32
    %65 = vector.broadcast %cst_53 : f32 to vector<8x8xf32>
    %66 = arith.mulf %62, %65 : vector<8x8xf32>
    %cst_54 = arith.constant 0.000000e+00 : f32
    %67 = vector.broadcast %cst_54 : f32 to vector<8x8xf32>
    %68 = arith.cmpf oge, %66, %67 : vector<8x8xf32>
    %cst_55 = arith.constant 1.000000e+00 : f32
    %cst_56 = arith.constant -1.000000e+00 : f32
    %69 = vector.broadcast %cst_55 : f32 to vector<8x8xf32>
    %70 = vector.broadcast %cst_56 : f32 to vector<8x8xf32>
    %71 = arith.select %68, %69, %70 : vector<8x8xi1>, vector<8x8xf32>
    %72 = math.absf %66 : vector<8x8xf32>
    %cst_57 = arith.constant 0.327591091 : f32
    %73 = vector.broadcast %cst_57 : f32 to vector<8x8xf32>
    %74 = arith.mulf %73, %72 : vector<8x8xf32>
    %cst_58 = arith.constant 1.000000e+00 : f32
    %75 = vector.broadcast %cst_58 : f32 to vector<8x8xf32>
    %76 = arith.addf %75, %74 : vector<8x8xf32>
    %77 = tpu.reciprocal %76 {approx = true} : vector<8x8xf32> -> vector<8x8xf32>
    %78 = arith.mulf %76, %77 : vector<8x8xf32>
    %cst_59 = arith.constant 2.000000e+00 : f32
    %79 = vector.broadcast %cst_59 : f32 to vector<8x8xf32>
    %80 = arith.subf %79, %78 : vector<8x8xf32>
    %81 = arith.mulf %77, %80 : vector<8x8xf32>
    %cst_60 = arith.constant 1.06140542 : f32
    %82 = vector.broadcast %cst_60 : f32 to vector<8x8xf32>
    %83 = arith.mulf %81, %82 : vector<8x8xf32>
    %cst_61 = arith.constant -1.45315206 : f32
    %84 = vector.broadcast %cst_61 : f32 to vector<8x8xf32>
    %85 = arith.addf %84, %83 : vector<8x8xf32>
    %86 = arith.mulf %81, %85 : vector<8x8xf32>
    %cst_62 = arith.constant 1.42141378 : f32
    %87 = vector.broadcast %cst_62 : f32 to vector<8x8xf32>
    %88 = arith.addf %87, %86 : vector<8x8xf32>
    %89 = arith.mulf %81, %88 : vector<8x8xf32>
    %cst_63 = arith.constant -0.284496725 : f32
    %90 = vector.broadcast %cst_63 : f32 to vector<8x8xf32>
    %91 = arith.addf %90, %89 : vector<8x8xf32>
    %92 = arith.mulf %81, %91 : vector<8x8xf32>
    %cst_64 = arith.constant 0.254829586 : f32
    %93 = vector.broadcast %cst_64 : f32 to vector<8x8xf32>
    %94 = arith.addf %93, %92 : vector<8x8xf32>
    %95 = arith.mulf %81, %94 : vector<8x8xf32>
    %cst_65 = arith.constant 0.000000e+00 : f32
    %96 = vector.broadcast %cst_65 : f32 to vector<8x8xf32>
    %97 = arith.subf %96, %72 : vector<8x8xf32>
    %98 = arith.mulf %97, %72 : vector<8x8xf32>
    %99 = math.exp %98 : vector<8x8xf32>
    %100 = arith.mulf %95, %99 : vector<8x8xf32>
    %cst_66 = arith.constant 1.000000e+00 : f32
    %101 = vector.broadcast %cst_66 : f32 to vector<8x8xf32>
    %102 = arith.subf %101, %100 : vector<8x8xf32>
    %103 = arith.mulf %71, %102 : vector<8x8xf32>
    %cst_67 = arith.constant 1.000000e+00 : f32
    %104 = vector.broadcast %cst_67 : f32 to vector<8x8xf32>
    %105 = arith.addf %104, %103 : vector<8x8xf32>
    %106 = arith.mulf %64, %105 : vector<8x8xf32>
    %cst_68 = arith.constant dense<0.000000e+00> : vector<8x8xf32>
    %107 = tpu.matmul %106, %7, %cst_68 {dimension_numbers = #tpu.dot_dimension_numbers<[1], [0], [0], [1], [0, 0, 1, 1], [], []>} : vector<8x8xf32>, vector<8x8xf32>, vector<8x8xf32> -> vector<8x8xf32>
    %cst_69 = arith.constant dense<0.000000e+00> : vector<8x8xf32>
    %108 = tpu.matmul %106, %9, %cst_69 {dimension_numbers = #tpu.dot_dimension_numbers<[1], [0], [0], [1], [0, 0, 1, 1], [], []>} : vector<8x8xf32>, vector<8x8xf32>, vector<8x8xf32> -> vector<8x8xf32>
    %cst_70 = arith.constant dense<0.000000e+00> : vector<8x8xf32>
    %109 = tpu.matmul %106, %11, %cst_70 {dimension_numbers = #tpu.dot_dimension_numbers<[1], [0], [0], [1], [0, 0, 1, 1], [], []>} : vector<8x8xf32>, vector<8x8xf32>, vector<8x8xf32> -> vector<8x8xf32>
    %110 = vector.extract_strided_slice %107 {offsets = [7, 0], sizes = [1, 8], strides = [1, 1]} : vector<8x8xf32> to vector<1x8xf32>
    %111 = vector.extract_strided_slice %107 {offsets = [0, 0], sizes = [7, 8], strides = [1, 1]} : vector<8x8xf32> to vector<7x8xf32>
    %112 = tpu.concatenate %110, %111 in 0 : vector<1x8xf32>, vector<7x8xf32> -> vector<8x8xf32>
    %113 = arith.addf %112, %108 : vector<8x8xf32>
    %114 = vector.extract_strided_slice %109 {offsets = [1, 0], sizes = [7, 8], strides = [1, 1]} : vector<8x8xf32> to vector<7x8xf32>
    %115 = vector.extract_strided_slice %109 {offsets = [0, 0], sizes = [1, 8], strides = [1, 1]} : vector<8x8xf32> to vector<1x8xf32>
    %116 = tpu.concatenate %114, %115 in 0 : vector<7x8xf32>, vector<1x8xf32> -> vector<8x8xf32>
    %117 = arith.addf %113, %116 : vector<8x8xf32>
    %118 = vector.broadcast %15 : vector<1x8xf32> to vector<8x8xf32>
    %119 = arith.addf %117, %118 : vector<8x8xf32>
    %cst_71 = arith.constant dense<0.000000e+00> : vector<8xf32>
    %120 = vector.multi_reduction <add>, %119, %cst_71 [1] : vector<8x8xf32> to vector<8xf32>
    %121 = vector.shape_cast %120 : vector<8xf32> to vector<8x1xf32>
    %cst_72 = arith.constant 8.000000e+00 : f32
    %122 = vector.broadcast %cst_72 : f32 to vector<8x1xf32>
    %123 = arith.divf %121, %122 : vector<8x1xf32>
    %124 = arith.mulf %119, %119 : vector<8x8xf32>
    %cst_73 = arith.constant dense<0.000000e+00> : vector<8xf32>
    %125 = vector.multi_reduction <add>, %124, %cst_73 [1] : vector<8x8xf32> to vector<8xf32>
    %126 = vector.shape_cast %125 : vector<8xf32> to vector<8x1xf32>
    %cst_74 = arith.constant 8.000000e+00 : f32
    %127 = vector.broadcast %cst_74 : f32 to vector<8x1xf32>
    %128 = arith.divf %126, %127 : vector<8x1xf32>
    %129 = arith.mulf %123, %123 : vector<8x1xf32>
    %130 = arith.subf %128, %129 : vector<8x1xf32>
    %cst_75 = arith.constant 0.000000e+00 : f32
    %131 = vector.broadcast %cst_75 : f32 to vector<8x1xf32>
    %132 = arith.maximumf %130, %131 : vector<8x1xf32>
    %133 = vector.broadcast %123 : vector<8x1xf32> to vector<8x8xf32>
    %134 = arith.subf %119, %133 : vector<8x8xf32>
    %cst_76 = arith.constant 9.99999974E-6 : f32
    %135 = vector.broadcast %cst_76 : f32 to vector<8x1xf32>
    %136 = arith.addf %132, %135 : vector<8x1xf32>
    %137 = math.rsqrt %136 : vector<8x1xf32>
    %138 = vector.broadcast %137 : vector<8x1xf32> to vector<8x8xf32>
    %139 = arith.mulf %134, %138 : vector<8x8xf32>
    %140 = vector.broadcast %16 : vector<1x8xf32> to vector<8x8xf32>
    %141 = arith.mulf %139, %140 : vector<8x8xf32>
    %142 = vector.broadcast %17 : vector<1x8xf32> to vector<8x8xf32>
    %143 = arith.addf %141, %142 : vector<8x8xf32>
    %cst_77 = arith.constant 5.000000e-01 : f32
    %144 = vector.broadcast %cst_77 : f32 to vector<8x8xf32>
    %145 = arith.mulf %144, %143 : vector<8x8xf32>
    %cst_78 = arith.constant 0.707106769 : f32
    %146 = vector.broadcast %cst_78 : f32 to vector<8x8xf32>
    %147 = arith.mulf %143, %146 : vector<8x8xf32>
    %cst_79 = arith.constant 0.000000e+00 : f32
    %148 = vector.broadcast %cst_79 : f32 to vector<8x8xf32>
    %149 = arith.cmpf oge, %147, %148 : vector<8x8xf32>
    %cst_80 = arith.constant 1.000000e+00 : f32
    %cst_81 = arith.constant -1.000000e+00 : f32
    %150 = vector.broadcast %cst_80 : f32 to vector<8x8xf32>
    %151 = vector.broadcast %cst_81 : f32 to vector<8x8xf32>
    %152 = arith.select %149, %150, %151 : vector<8x8xi1>, vector<8x8xf32>
    %153 = math.absf %147 : vector<8x8xf32>
    %cst_82 = arith.constant 0.327591091 : f32
    %154 = vector.broadcast %cst_82 : f32 to vector<8x8xf32>
    %155 = arith.mulf %154, %153 : vector<8x8xf32>
    %cst_83 = arith.constant 1.000000e+00 : f32
    %156 = vector.broadcast %cst_83 : f32 to vector<8x8xf32>
    %157 = arith.addf %156, %155 : vector<8x8xf32>
    %158 = tpu.reciprocal %157 {approx = true} : vector<8x8xf32> -> vector<8x8xf32>
    %159 = arith.mulf %157, %158 : vector<8x8xf32>
    %cst_84 = arith.constant 2.000000e+00 : f32
    %160 = vector.broadcast %cst_84 : f32 to vector<8x8xf32>
    %161 = arith.subf %160, %159 : vector<8x8xf32>
    %162 = arith.mulf %158, %161 : vector<8x8xf32>
    %cst_85 = arith.constant 1.06140542 : f32
    %163 = vector.broadcast %cst_85 : f32 to vector<8x8xf32>
    %164 = arith.mulf %162, %163 : vector<8x8xf32>
    %cst_86 = arith.constant -1.45315206 : f32
    %165 = vector.broadcast %cst_86 : f32 to vector<8x8xf32>
    %166 = arith.addf %165, %164 : vector<8x8xf32>
    %167 = arith.mulf %162, %166 : vector<8x8xf32>
    %cst_87 = arith.constant 1.42141378 : f32
    %168 = vector.broadcast %cst_87 : f32 to vector<8x8xf32>
    %169 = arith.addf %168, %167 : vector<8x8xf32>
    %170 = arith.mulf %162, %169 : vector<8x8xf32>
    %cst_88 = arith.constant -0.284496725 : f32
    %171 = vector.broadcast %cst_88 : f32 to vector<8x8xf32>
    %172 = arith.addf %171, %170 : vector<8x8xf32>
    %173 = arith.mulf %162, %172 : vector<8x8xf32>
    %cst_89 = arith.constant 0.254829586 : f32
    %174 = vector.broadcast %cst_89 : f32 to vector<8x8xf32>
    %175 = arith.addf %174, %173 : vector<8x8xf32>
    %176 = arith.mulf %162, %175 : vector<8x8xf32>
    %cst_90 = arith.constant 0.000000e+00 : f32
    %177 = vector.broadcast %cst_90 : f32 to vector<8x8xf32>
    %178 = arith.subf %177, %153 : vector<8x8xf32>
    %179 = arith.mulf %178, %153 : vector<8x8xf32>
    %180 = math.exp %179 : vector<8x8xf32>
    %181 = arith.mulf %176, %180 : vector<8x8xf32>
    %cst_91 = arith.constant 1.000000e+00 : f32
    %182 = vector.broadcast %cst_91 : f32 to vector<8x8xf32>
    %183 = arith.subf %182, %181 : vector<8x8xf32>
    %184 = arith.mulf %152, %183 : vector<8x8xf32>
    %cst_92 = arith.constant 1.000000e+00 : f32
    %185 = vector.broadcast %cst_92 : f32 to vector<8x8xf32>
    %186 = arith.addf %185, %184 : vector<8x8xf32>
    %187 = arith.mulf %145, %186 : vector<8x8xf32>
    %cst_93 = arith.constant dense<0.000000e+00> : vector<8x16xf32>
    %188 = tpu.matmul %24, %18, %cst_93 {dimension_numbers = #tpu.dot_dimension_numbers<[1], [0], [0], [1], [0, 0, 1, 1], [], []>} : vector<8x16xf32>, vector<16x16xf32>, vector<8x16xf32> -> vector<8x16xf32>
    %cst_94 = arith.constant dense<0.000000e+00> : vector<8x16xf32>
    %189 = tpu.matmul %187, %19, %cst_94 {dimension_numbers = #tpu.dot_dimension_numbers<[1], [0], [0], [1], [0, 0, 1, 1], [], []>} : vector<8x8xf32>, vector<8x16xf32>, vector<8x16xf32> -> vector<8x16xf32>
    %190 = arith.addf %188, %189 : vector<8x16xf32>
    %191 = vector.broadcast %20 : vector<1x16xf32> to vector<8x16xf32>
    %192 = arith.addf %190, %191 : vector<8x16xf32>
    %cst_95 = arith.constant dense<0.000000e+00> : vector<8xf32>
    %193 = vector.multi_reduction <add>, %192, %cst_95 [1] : vector<8x16xf32> to vector<8xf32>
    %194 = vector.shape_cast %193 : vector<8xf32> to vector<8x1xf32>
    %cst_96 = arith.constant 1.600000e+01 : f32
    %195 = vector.broadcast %cst_96 : f32 to vector<8x1xf32>
    %196 = arith.divf %194, %195 : vector<8x1xf32>
    %197 = arith.mulf %192, %192 : vector<8x16xf32>
    %cst_97 = arith.constant dense<0.000000e+00> : vector<8xf32>
    %198 = vector.multi_reduction <add>, %197, %cst_97 [1] : vector<8x16xf32> to vector<8xf32>
    %199 = vector.shape_cast %198 : vector<8xf32> to vector<8x1xf32>
    %cst_98 = arith.constant 1.600000e+01 : f32
    %200 = vector.broadcast %cst_98 : f32 to vector<8x1xf32>
    %201 = arith.divf %199, %200 : vector<8x1xf32>
    %202 = arith.mulf %196, %196 : vector<8x1xf32>
    %203 = arith.subf %201, %202 : vector<8x1xf32>
    %cst_99 = arith.constant 0.000000e+00 : f32
    %204 = vector.broadcast %cst_99 : f32 to vector<8x1xf32>
    %205 = arith.maximumf %203, %204 : vector<8x1xf32>
    %206 = vector.broadcast %196 : vector<8x1xf32> to vector<8x16xf32>
    %207 = arith.subf %192, %206 : vector<8x16xf32>
    %cst_100 = arith.constant 9.99999974E-6 : f32
    %208 = vector.broadcast %cst_100 : f32 to vector<8x1xf32>
    %209 = arith.addf %205, %208 : vector<8x1xf32>
    %210 = math.rsqrt %209 : vector<8x1xf32>
    %211 = vector.broadcast %210 : vector<8x1xf32> to vector<8x16xf32>
    %212 = arith.mulf %207, %211 : vector<8x16xf32>
    %213 = vector.broadcast %21 : vector<1x16xf32> to vector<8x16xf32>
    %214 = arith.mulf %212, %213 : vector<8x16xf32>
    %215 = vector.broadcast %22 : vector<1x16xf32> to vector<8x16xf32>
    %216 = arith.addf %214, %215 : vector<8x16xf32>
    %cst_101 = arith.constant 5.000000e-01 : f32
    %217 = vector.broadcast %cst_101 : f32 to vector<8x16xf32>
    %218 = arith.mulf %217, %216 : vector<8x16xf32>
    %cst_102 = arith.constant 0.707106769 : f32
    %219 = vector.broadcast %cst_102 : f32 to vector<8x16xf32>
    %220 = arith.mulf %216, %219 : vector<8x16xf32>
    %cst_103 = arith.constant 0.000000e+00 : f32
    %221 = vector.broadcast %cst_103 : f32 to vector<8x16xf32>
    %222 = arith.cmpf oge, %220, %221 : vector<8x16xf32>
    %cst_104 = arith.constant 1.000000e+00 : f32
    %cst_105 = arith.constant -1.000000e+00 : f32
    %223 = vector.broadcast %cst_104 : f32 to vector<8x16xf32>
    %224 = vector.broadcast %cst_105 : f32 to vector<8x16xf32>
    %225 = arith.select %222, %223, %224 : vector<8x16xi1>, vector<8x16xf32>
    %226 = math.absf %220 : vector<8x16xf32>
    %cst_106 = arith.constant 0.327591091 : f32
    %227 = vector.broadcast %cst_106 : f32 to vector<8x16xf32>
    %228 = arith.mulf %227, %226 : vector<8x16xf32>
    %cst_107 = arith.constant 1.000000e+00 : f32
    %229 = vector.broadcast %cst_107 : f32 to vector<8x16xf32>
    %230 = arith.addf %229, %228 : vector<8x16xf32>
    %231 = tpu.reciprocal %230 {approx = true} : vector<8x16xf32> -> vector<8x16xf32>
    %232 = arith.mulf %230, %231 : vector<8x16xf32>
    %cst_108 = arith.constant 2.000000e+00 : f32
    %233 = vector.broadcast %cst_108 : f32 to vector<8x16xf32>
    %234 = arith.subf %233, %232 : vector<8x16xf32>
    %235 = arith.mulf %231, %234 : vector<8x16xf32>
    %cst_109 = arith.constant 1.06140542 : f32
    %236 = vector.broadcast %cst_109 : f32 to vector<8x16xf32>
    %237 = arith.mulf %235, %236 : vector<8x16xf32>
    %cst_110 = arith.constant -1.45315206 : f32
    %238 = vector.broadcast %cst_110 : f32 to vector<8x16xf32>
    %239 = arith.addf %238, %237 : vector<8x16xf32>
    %240 = arith.mulf %235, %239 : vector<8x16xf32>
    %cst_111 = arith.constant 1.42141378 : f32
    %241 = vector.broadcast %cst_111 : f32 to vector<8x16xf32>
    %242 = arith.addf %241, %240 : vector<8x16xf32>
    %243 = arith.mulf %235, %242 : vector<8x16xf32>
    %cst_112 = arith.constant -0.284496725 : f32
    %244 = vector.broadcast %cst_112 : f32 to vector<8x16xf32>
    %245 = arith.addf %244, %243 : vector<8x16xf32>
    %246 = arith.mulf %235, %245 : vector<8x16xf32>
    %cst_113 = arith.constant 0.254829586 : f32
    %247 = vector.broadcast %cst_113 : f32 to vector<8x16xf32>
    %248 = arith.addf %247, %246 : vector<8x16xf32>
    %249 = arith.mulf %235, %248 : vector<8x16xf32>
    %cst_114 = arith.constant 0.000000e+00 : f32
    %250 = vector.broadcast %cst_114 : f32 to vector<8x16xf32>
    %251 = arith.subf %250, %226 : vector<8x16xf32>
    %252 = arith.mulf %251, %226 : vector<8x16xf32>
    %253 = math.exp %252 : vector<8x16xf32>
    %254 = arith.mulf %249, %253 : vector<8x16xf32>
    %cst_115 = arith.constant 1.000000e+00 : f32
    %255 = vector.broadcast %cst_115 : f32 to vector<8x16xf32>
    %256 = arith.subf %255, %254 : vector<8x16xf32>
    %257 = arith.mulf %225, %256 : vector<8x16xf32>
    %cst_116 = arith.constant 1.000000e+00 : f32
    %258 = vector.broadcast %cst_116 : f32 to vector<8x16xf32>
    %259 = arith.addf %258, %257 : vector<8x16xf32>
    %260 = arith.mulf %218, %259 : vector<8x16xf32>
    %c0_117 = arith.constant 0 : index
    %c0_118 = arith.constant 0 : index
    %c0_119 = arith.constant 0 : index
    %261 = vector.load %arg11[%c0_117, %c0_118, %c0_119] : memref<1x8x16xf32, #tpu.memory_space<vmem>>, vector<1x8x16xf32>
    %262 = vector.shape_cast %261 : vector<1x8x16xf32> to vector<8x16xf32>
    %263 = vector.shape_cast %260 : vector<8x16xf32> to vector<1x8x16xf32>
    tpu.vector_store %arg11[%c0_117, %c0_118, %c0_119], %263 {strides = array<i32>} : memref<1x8x16xf32, #tpu.memory_space<vmem>>, vector<1x8x16xf32>,
    return
  }
  func.func @transform_0(%arg0: i32) -> (i32, i32, i32) {
    %c0_i32 = arith.constant 0 : i32
    %c0_i32_0 = arith.constant 0 : i32
    %c0_i32_1 = arith.constant 0 : i32
    return %arg0, %c0_i32, %c0_i32_0 : i32, i32, i32
  }
  func.func @transform_1(%arg0: i32) -> (i32, i32, i32, i32) {
    %c0_i32 = arith.constant 0 : i32
    %c0_i32_0 = arith.constant 0 : i32
    %c0_i32_1 = arith.constant 0 : i32
    %c0_i32_2 = arith.constant 0 : i32
    %c0_i32_3 = arith.constant 0 : i32
    return %c0_i32, %c0_i32_0, %c0_i32_1, %c0_i32_2 : i32, i32, i32, i32
  }
  func.func @transform_2(%arg0: i32) -> (i32, i32, i32) {
    %c0_i32 = arith.constant 0 : i32
    %c0_i32_0 = arith.constant 0 : i32
    %c0_i32_1 = arith.constant 0 : i32
    %c0_i32_2 = arith.constant 0 : i32
    return %c0_i32, %c0_i32_0, %c0_i32_1 : i32, i32, i32
  }
  func.func @transform_3(%arg0: i32) -> (i32, i32) {
    %c0_i32 = arith.constant 0 : i32
    %c0_i32_0 = arith.constant 0 : i32
    %c0_i32_1 = arith.constant 0 : i32
    return %c0_i32, %c0_i32_0 : i32, i32
  }
  func.func @transform_4(%arg0: i32) -> (i32, i32) {
    %c0_i32 = arith.constant 0 : i32
    %c0_i32_0 = arith.constant 0 : i32
    %c0_i32_1 = arith.constant 0 : i32
    return %c0_i32, %c0_i32_0 : i32, i32
  }
  func.func @transform_5(%arg0: i32) -> (i32, i32) {
    %c0_i32 = arith.constant 0 : i32
    %c0_i32_0 = arith.constant 0 : i32
    %c0_i32_1 = arith.constant 0 : i32
    return %c0_i32, %c0_i32_0 : i32, i32
  }
  func.func @transform_6(%arg0: i32) -> (i32, i32) {
    %c0_i32 = arith.constant 0 : i32
    %c0_i32_0 = arith.constant 0 : i32
    %c0_i32_1 = arith.constant 0 : i32
    return %c0_i32, %c0_i32_0 : i32, i32
  }
  func.func @transform_7(%arg0: i32) -> (i32, i32) {
    %c0_i32 = arith.constant 0 : i32
    %c0_i32_0 = arith.constant 0 : i32
    %c0_i32_1 = arith.constant 0 : i32
    return %c0_i32, %c0_i32_0 : i32, i32
  }
  func.func @transform_8(%arg0: i32) -> (i32, i32) {
    %c0_i32 = arith.constant 0 : i32
    %c0_i32_0 = arith.constant 0 : i32
    %c0_i32_1 = arith.constant 0 : i32
    return %c0_i32, %c0_i32_0 : i32, i32
  }
  func.func @transform_9(%arg0: i32) -> (i32, i32) {
    %c0_i32 = arith.constant 0 : i32
    %c0_i32_0 = arith.constant 0 : i32
    %c0_i32_1 = arith.constant 0 : i32
    return %c0_i32, %c0_i32_0 : i32, i32
  }
  func.func @transform_10(%arg0: i32) -> (i32, i32, i32) {
    %c0_i32 = arith.constant 0 : i32
    %c0_i32_0 = arith.constant 0 : i32
    %c0_i32_1 = arith.constant 0 : i32
    return %arg0, %c0_i32, %c0_i32_0 : i32, i32, i32
  }
}

</mosaic_0001>

<llo_original>
// kernel: tpu_custom_call.1
$region0: #{tpu_custom_call.1}
  #allocation0 [shape = 'u32[]', space=smem, size = 0x4, offset = 0x4, fixed_abs, tag = 'smem constant byte address 0x4 - core index']
  #allocation1 [shape = 'u32[144,128]{1,0:T(1,128)}', space=vmem, size = 0x12000, scoped, tag = 'internal scratch']
  %s0 = inlined_call_operand.hbm [shape: f32[8,128], index: 0, kind: input, shape index: {}]
  %s1 = inlined_call_operand.hbm [shape: f32[8,128], index: 1, kind: output, shape index: {}]
  %s2 = sld [smem:[#allocation0]]
  $region18: #{tpu_custom_call.1} parent=0
    _
  %s4 = ssub.s32 1, %s2
  %s5 = scalar_select 0, %s4, %s2
  $region1: #{tpu_custom_call.1} parent=0
    #allocation2 [shape = 'u8[4096]{0}', space=vmem, size = 0x1000, scoped, tag = 'input window, operand 0, single buffered']
    #allocation3 [shape = 's32[1]{0}', space=sflag, size = 0x4, scoped, tag = 'scoped memory for tpu_custom_call.1']
    #allocation4 [shape = 's32[1]{0}', space=sflag, size = 0x4, scoped, tag = 'scoped memory for tpu_custom_call.1']
    #allocation5 [shape = 'u8[4096]{0}', space=vmem, size = 0x1000, scoped, tag = 'output window, operand 0, single buffered']
    %6 = vsyncpa [#allocation3], 0
    %7 = vsyncpa [#allocation4], 0
    // Predicated region
    $region2: #{tpu_custom_call.1} parent=1 // pred_check
      _
    $region3: #{tpu_custom_call.1} parent=1 // pred_check_branch
      %9 = sbr.rel (0) target = $region5
    $region4: #{tpu_custom_call.1} parent=1 // pred_region
      %s11 = ssub.s32 128, 128
      %12 = vsyncadd [#allocation3], %s11
      %s14 = sshll.u32 [#allocation2], 4
      %s15 = int_to_ptr.vmem [resolvable:$true] %s14
      %17 = dma.hbm_to_vmem [thread:$0]  %s0, 128, %s15, [#allocation3]
    $region5: #{tpu_custom_call.1} parent=1 // pred_fallthru
      _
    // Predicated region
    $region6: #{tpu_custom_call.1} parent=1 // pred_check
      _
    $region7: #{tpu_custom_call.1} parent=1 // pred_check_branch
      %19 = sbr.rel (0) target = $region9
    $region8: #{tpu_custom_call.1} parent=1 // pred_region
      %20 = dma.done [#allocation3], 128
    $region9: #{tpu_custom_call.1} parent=1 // pred_fallthru
      _
    %v21 = vld [vmem:[#allocation2] sm:$0xff]
    %v22 = vrot.slane %v21, 7
    %23 = vst [vmem:[#allocation5] sm:$0xff] %v22
    // Predicated region
    $region10: #{tpu_custom_call.1} parent=1 // pred_check
      _
    $region11: #{tpu_custom_call.1} parent=1 // pred_check_branch
      %25 = sbr.rel (0) target = $region13
    $region12: #{tpu_custom_call.1} parent=1 // pred_region
      %s27 = ssub.s32 128, 128
      %28 = vsyncadd [#allocation4], %s27
      %s30 = sshll.u32 [#allocation5], 4
      %s31 = int_to_ptr.vmem [resolvable:$true] %s30
      %33 = dma.vmem_to_hbm [thread:$0]  %s31, 128, %s1, [#allocation4]
    $region13: #{tpu_custom_call.1} parent=1 // pred_fallthru
      _
    // Predicated region
    $region14: #{tpu_custom_call.1} parent=1 // pred_check
      _
    $region15: #{tpu_custom_call.1} parent=1 // pred_check_branch
      %35 = sbr.rel (0) target = $region17
    $region16: #{tpu_custom_call.1} parent=1 // pred_region
      %36 = dma.done [#allocation4], 128
    $region17: #{tpu_custom_call.1} parent=1 // pred_fallthru
      _
    %37 = vsyncpa [#allocation3], 1
    %38 = vsyncpa [#allocation4], 1

// kernel: tpu_custom_call.1
$region0: #{tpu_custom_call.1}
  #allocation0 [shape = 'u32[]', space=smem, size = 0x4, offset = 0x4, fixed_abs, tag = 'smem constant byte address 0x4 - core index']
  #allocation1 [shape = 'u32[144,128]{1,0:T(1,128)}', space=vmem, size = 0x12000, scoped, tag = 'internal scratch']
  %s0 = inlined_call_operand.hbm [shape: f32[2,8,16], index: 0, kind: input, shape index: {}]
  %s1 = inlined_call_operand.hbm [shape: f32[2,3,8,8], index: 1, kind: input, shape index: {}]
  %s2 = inlined_call_operand.vmem [shape: f32[2,1,8], index: 2, kind: input, shape index: {}]
  %s3 = inlined_call_operand.hbm [shape: f32[1,8], index: 3, kind: input, shape index: {}]
  %s4 = inlined_call_operand.hbm [shape: f32[1,8], index: 4, kind: input, shape index: {}]
  %s5 = inlined_call_operand.vmem [shape: f32[16,16], index: 5, kind: input, shape index: {}]
  %s6 = inlined_call_operand.hbm [shape: f32[8,16], index: 6, kind: input, shape index: {}]
  %s7 = inlined_call_operand.vmem [shape: f32[1,16], index: 7, kind: input, shape index: {}]
  %s8 = inlined_call_operand.vmem [shape: f32[1,16], index: 8, kind: input, shape index: {}]
  %s9 = inlined_call_operand.vmem [shape: f32[1,16], index: 9, kind: input, shape index: {}]
  %s10 = inlined_call_operand.hbm [shape: f32[2,8,16], index: 10, kind: output, shape index: {}]
  %s11 = sld [smem:[#allocation0]]
  $region93: #{tpu_custom_call.1} parent=0
    _
  %s13 = ssub.s32 1, %s11
  %s14 = scalar_select 0, %s13, %s11
  $region1: #{tpu_custom_call.1} parent=0
    #allocation2 [shape = 'u8[8192]{0}', space=vmem, size = 0x2000, scoped, tag = 'input window, operand 0']
    #allocation3 [shape = 's32[2]{0}', space=sflag, size = 0x8, scoped, tag = 'scoped memory for tpu_custom_call.1']
    #allocation4 [shape = 's32[2]{0}', space=sflag, size = 0x8, scoped, tag = 'scoped memory for tpu_custom_call.1']
    #allocation5 [shape = 'u8[24576]{0}', space=vmem, size = 0x6000, scoped, tag = 'input window, operand 1, single buffered']
    #allocation6 [shape = 's32[1]{0}', space=sflag, size = 0x4, scoped, tag = 'scoped memory for tpu_custom_call.1']
    #allocation7 [shape = 'u8[512]{0}', space=vmem, size = 0x400, scoped, tag = 'input window, operand 3, single buffered']
    #allocation8 [shape = 'u8[512]{0}', space=vmem, size = 0x400, scoped, tag = 'input window, operand 4, single buffered']
    #allocation9 [shape = 's32[1]{0}', space=sflag, size = 0x4, scoped, tag = 'scoped memory for tpu_custom_call.1']
    #allocation10 [shape = 'u8[4096]{0}', space=vmem, size = 0x1000, scoped, tag = 'input window, operand 6, single buffered']
    #allocation11 [shape = 'u8[8192]{0}', space=vmem, size = 0x2000, scoped, tag = 'output window, operand 0']
    %15 = vsyncpa [#allocation3], 0
    %s16 = scalar_lea.sflag [#allocation3], 1
    %17 = vsyncpa %s16, 0
    %18 = vsyncpa [#allocation6], 0
    %19 = vsyncpa [#allocation9], 0
    %20 = vsyncpa [#allocation4], 0
    %s21 = scalar_lea.sflag [#allocation4], 1
    %22 = vsyncpa %s21, 0
    loop: start=0, step=1, limit=4
    $region2: #{tpu_custom_call.1} parent=1 // loop_pre_header
      _
    $region3: #{tpu_custom_call.1} parent=1 // loop_header
      %s24 = sphi 0, %s28
      %p25 = scmp.ge.s32.totalorder %s24, 4
      %s34 = sphi 0, %s36
      %s37 = sphi 0, %s34
      %s38 = sphi 0, %s37
      %s54 = sphi 0, %s38
      %s58 = sphi 0, %s58
      %s60 = sphi 0, %s58
      %s61 = sphi 0, %s60
      %s75 = sphi 0, %s61
      %s79 = sphi 0, %s79
      %s81 = sphi 0, %s79
      %s82 = sphi 0, %s81
      %s96 = sphi 0, %s82
      %s100 = sphi 0, %s100
      %s102 = sphi 0, %s100
      %s103 = sphi 0, %s102
      %s117 = sphi 0, %s103
      %s121 = sphi 0, %s121
      %s123 = sphi 0, %s121
      %s124 = sphi 0, %s123
      %s138 = sphi 0, %s124
      %s142 = sphi 0, %s142
      %s144 = sphi 0, %s142
      %s145 = sphi 0, %s144
      %s159 = sphi 0, %s145
      %s163 = sphi 0, %s163
      %s165 = sphi 0, %s163
      %s166 = sphi 0, %s165
      %s180 = sphi 0, %s166
      %s184 = sphi 0, %s184
      %s186 = sphi 0, %s184
      %s187 = sphi 0, %s186
      %s201 = sphi 0, %s187
      %s205 = sphi 0, %s205
      %s207 = sphi 0, %s205
      %s208 = sphi 0, %s207
      %s222 = sphi 0, %s208
      %s226 = sphi 0, %s226
      %s228 = sphi 0, %s226
      %s229 = sphi 0, %s228
      %s243 = sphi 0, %s229
      %s249 = sphi 0, %s251
      %s252 = sphi 0, %s249
      %s253 = sphi 0, %s252
      %s269 = sphi 0, %s253
    $region4: #{tpu_custom_call.1} parent=1 // loop_header_branch
      %27 = sbr.rel (%p25) target = $region8
    $region5: #{tpu_custom_call.1} parent=1 // loop_body
      %s29 = ssub.s32 %s24, 1
      %s30 = ssub.s32 %s24, 2
      %s31 = sadd.s32 %s24, 1
      %s32 = ssub.s32 %s24, %s31
      %p33 = scmp.eq.s32.totalorder %s32, 0
      %s35 = sadd.s32 %s34, 1
      %s36 = scalar_select %p33, %s34, %s35
      %p39 = pneg %p33
      %p40 = scmp.eq.s32.totalorder %s24, 1
      %p41 = por %p39, %p40
      %p42 = scmp.ne.s32.totalorder %s34, %s37
      %p43 = scmp.eq.s32.totalorder %s24, 0
      %p44 = por %p42, %p43
      %p45 = scmp.ne.s32.totalorder %s34, %s37
      %p46 = scmp.eq.s32.totalorder %s29, 1
      %p47 = por %p45, %p46
      %p48 = scmp.ne.s32.totalorder %s37, %s38
      %p49 = scmp.eq.s32.totalorder %s29, 0
      %p50 = por %p48, %p49
      %p51 = scmp.ne.s32.totalorder %s37, %s38
      %p52 = scmp.eq.s32.totalorder %s30, 1
      %p53 = por %p51, %p52
      %p55 = scmp.ne.s32.totalorder %s38, %s54
      %p56 = scmp.eq.s32.totalorder %s30, 0
      %p57 = por %p55, %p56
      %s59 = sadd.s32 %s58, 1
      %p62 = scmp.eq.s32.totalorder %s24, 1
      %p63 = scmp.ne.s32.totalorder %s58, %s60
      %p64 = scmp.eq.s32.totalorder %s24, 0
      %p65 = por %p63, %p64
      %p66 = scmp.ne.s32.totalorder %s58, %s60
      %p67 = scmp.eq.s32.totalorder %s29, 1
      %p68 = por %p66, %p67
      %p69 = scmp.ne.s32.totalorder %s60, %s61
      %p70 = scmp.eq.s32.totalorder %s29, 0
      %p71 = por %p69, %p70
      %p72 = scmp.ne.s32.totalorder %s60, %s61
      %p73 = scmp.eq.s32.totalorder %s30, 1
      %p74 = por %p72, %p73
      %p76 = scmp.ne.s32.totalorder %s61, %s75
      %p77 = scmp.eq.s32.totalorder %s30, 0
      %p78 = por %p76, %p77
      %s80 = sadd.s32 %s79, 1
      %p83 = scmp.eq.s32.totalorder %s24, 1
      %p84 = scmp.ne.s32.totalorder %s79, %s81
      %p85 = scmp.eq.s32.totalorder %s24, 0
      %p86 = por %p84, %p85
      %p87 = scmp.ne.s32.totalorder %s79, %s81
      %p88 = scmp.eq.s32.totalorder %s29, 1
      %p89 = por %p87, %p88
      %p90 = scmp.ne.s32.totalorder %s81, %s82
      %p91 = scmp.eq.s32.totalorder %s29, 0
      %p92 = por %p90, %p91
      %p93 = scmp.ne.s32.totalorder %s81, %s82
      %p94 = scmp.eq.s32.totalorder %s30, 1
      %p95 = por %p93, %p94
      %p97 = scmp.ne.s32.totalorder %s82, %s96
      %p98 = scmp.eq.s32.totalorder %s30, 0
      %p99 = por %p97, %p98
      %s101 = sadd.s32 %s100, 1
      %p104 = scmp.eq.s32.totalorder %s24, 1
      %p105 = scmp.ne.s32.totalorder %s100, %s102
      %p106 = scmp.eq.s32.totalorder %s24, 0
      %p107 = por %p105, %p106
      %p108 = scmp.ne.s32.totalorder %s100, %s102
      %p109 = scmp.eq.s32.totalorder %s29, 1
      %p110 = por %p108, %p109
      %p111 = scmp.ne.s32.totalorder %s102, %s103
      %p112 = scmp.eq.s32.totalorder %s29, 0
      %p113 = por %p111, %p112
      %p114 = scmp.ne.s32.totalorder %s102, %s103
      %p115 = scmp.eq.s32.totalorder %s30, 1
      %p116 = por %p114, %p115
      %p118 = scmp.ne.s32.totalorder %s103, %s117
      %p119 = scmp.eq.s32.totalorder %s30, 0
      %p120 = por %p118, %p119
      %s122 = sadd.s32 %s121, 1
      %p125 = scmp.eq.s32.totalorder %s24, 1
      %p126 = scmp.ne.s32.totalorder %s121, %s123
      %p127 = scmp.eq.s32.totalorder %s24, 0
      %p128 = por %p126, %p127
      %p129 = scmp.ne.s32.totalorder %s121, %s123
      %p130 = scmp.eq.s32.totalorder %s29, 1
      %p131 = por %p129, %p130
      %p132 = scmp.ne.s32.totalorder %s123, %s124
      %p133 = scmp.eq.s32.totalorder %s29, 0
      %p134 = por %p132, %p133
      %p135 = scmp.ne.s32.totalorder %s123, %s124
      %p136 = scmp.eq.s32.totalorder %s30, 1
      %p137 = por %p135, %p136
      %p139 = scmp.ne.s32.totalorder %s124, %s138
      %p140 = scmp.eq.s32.totalorder %s30, 0
      %p141 = por %p139, %p140
      %s143 = sadd.s32 %s142, 1
      %p146 = scmp.eq.s32.totalorder %s24, 1
      %p147 = scmp.ne.s32.totalorder %s142, %s144
      %p148 = scmp.eq.s32.totalorder %s24, 0
      %p149 = por %p147, %p148
      %p150 = scmp.ne.s32.totalorder %s142, %s144
      %p151 = scmp.eq.s32.totalorder %s29, 1
      %p152 = por %p150, %p151
      %p153 = scmp.ne.s32.totalorder %s144, %s145
      %p154 = scmp.eq.s32.totalorder %s29, 0
      %p155 = por %p153, %p154
      %p156 = scmp.ne.s32.totalorder %s144, %s145
      %p157 = scmp.eq.s32.totalorder %s30, 1
      %p158 = por %p156, %p157
      %p160 = scmp.ne.s32.totalorder %s145, %s159
      %p161 = scmp.eq.s32.totalorder %s30, 0
      %p162 = por %p160, %p161
      %s164 = sadd.s32 %s163, 1
      %p167 = scmp.eq.s32.totalorder %s24, 1
      %p168 = scmp.ne.s32.totalorder %s163, %s165
      %p169 = scmp.eq.s32.totalorder %s24, 0
      %p170 = por %p168, %p169
      %p171 = scmp.ne.s32.totalorder %s163, %s165
      %p172 = scmp.eq.s32.totalorder %s29, 1
      %p173 = por %p171, %p172
      %p174 = scmp.ne.s32.totalorder %s165, %s166
      %p175 = scmp.eq.s32.totalorder %s29, 0
      %p176 = por %p174, %p175
      %p177 = scmp.ne.s32.totalorder %s165, %s166
      %p178 = scmp.eq.s32.totalorder %s30, 1
      %p179 = por %p177, %p178
      %p181 = scmp.ne.s32.totalorder %s166, %s180
      %p182 = scmp.eq.s32.totalorder %s30, 0
      %p183 = por %p181, %p182
      %s185 = sadd.s32 %s184, 1
      %p188 = scmp.eq.s32.totalorder %s24, 1
      %p189 = scmp.ne.s32.totalorder %s184, %s186
      %p190 = scmp.eq.s32.totalorder %s24, 0
      %p191 = por %p189, %p190
      %p192 = scmp.ne.s32.totalorder %s184, %s186
      %p193 = scmp.eq.s32.totalorder %s29, 1
      %p194 = por %p192, %p193
      %p195 = scmp.ne.s32.totalorder %s186, %s187
      %p196 = scmp.eq.s32.totalorder %s29, 0
      %p197 = por %p195, %p196
      %p198 = scmp.ne.s32.totalorder %s186, %s187
      %p199 = scmp.eq.s32.totalorder %s30, 1
      %p200 = por %p198, %p199
      %p202 = scmp.ne.s32.totalorder %s187, %s201
      %p203 = scmp.eq.s32.totalorder %s30, 0
      %p204 = por %p202, %p203
      %s206 = sadd.s32 %s205, 1
      %p209 = scmp.eq.s32.totalorder %s24, 1
      %p210 = scmp.ne.s32.totalorder %s205, %s207
      %p211 = scmp.eq.s32.totalorder %s24, 0
      %p212 = por %p210, %p211
      %p213 = scmp.ne.s32.totalorder %s205, %s207
      %p214 = scmp.eq.s32.totalorder %s29, 1
      %p215 = por %p213, %p214
      %p216 = scmp.ne.s32.totalorder %s207, %s208
      %p217 = scmp.eq.s32.totalorder %s29, 0
      %p218 = por %p216, %p217
      %p219 = scmp.ne.s32.totalorder %s207, %s208
      %p220 = scmp.eq.s32.totalorder %s30, 1
      %p221 = por %p219, %p220
      %p223 = scmp.ne.s32.totalorder %s208, %s222
      %p224 = scmp.eq.s32.totalorder %s30, 0
      %p225 = por %p223, %p224
      %s227 = sadd.s32 %s226, 1
      %p230 = scmp.eq.s32.totalorder %s24, 1
      %p231 = scmp.ne.s32.totalorder %s226, %s228
      %p232 = scmp.eq.s32.totalorder %s24, 0
      %p233 = por %p231, %p232
      %p234 = scmp.ne.s32.totalorder %s226, %s228
      %p235 = scmp.eq.s32.totalorder %s29, 1
      %p236 = por %p234, %p235
      %p237 = scmp.ne.s32.totalorder %s228, %s229
      %p238 = scmp.eq.s32.totalorder %s29, 0
      %p239 = por %p237, %p238
      %p240 = scmp.ne.s32.totalorder %s228, %s229
      %p241 = scmp.eq.s32.totalorder %s30, 1
      %p242 = por %p240, %p241
      %p244 = scmp.ne.s32.totalorder %s229, %s243
      %p245 = scmp.eq.s32.totalorder %s30, 0
      %p246 = por %p244, %p245
      %s247 = ssub.s32 %s24, %s31
      %p248 = scmp.eq.s32.totalorder %s247, 0
      %s250 = sadd.s32 %s249, 1
      %s251 = scalar_select %p248, %s249, %s250
      %p254 = pneg %p248
      %p255 = scmp.eq.s32.totalorder %s24, 1
      %p256 = por %p254, %p255
      %p257 = scmp.ne.s32.totalorder %s249, %s252
      %p258 = scmp.eq.s32.totalorder %s24, 0
      %p259 = por %p257, %p258
      %p260 = scmp.ne.s32.totalorder %s249, %s252
      %p261 = scmp.eq.s32.totalorder %s29, 1
      %p262 = por %p260, %p261
      %p263 = scmp.ne.s32.totalorder %s252, %s253
      %p264 = scmp.eq.s32.totalorder %s29, 0
      %p265 = por %p263, %p264
      %p266 = scmp.ne.s32.totalorder %s252, %s253
      %p267 = scmp.eq.s32.totalorder %s30, 1
      %p268 = por %p266, %p267
      %p270 = scmp.ne.s32.totalorder %s253, %s269
      %p271 = scmp.eq.s32.totalorder %s30, 0
      %p272 = por %p270, %p271
      %p273 = scmp.le.s32.totalorder 1, %s24
      %p274 = scmp.lt.s32.totalorder %s24, 3
      %p275 = pnand %p273, %p274
      %p276 = pneg %p275
      // Predicated region
      $region9: #{tpu_custom_call.1} parent=5 // pred_check
        _
      $region10: #{tpu_custom_call.1} parent=5 // pred_check_branch
        %278 = sbr.rel (%p275) target = $region12
      $region11: #{tpu_custom_call.1} parent=5 // pred_region
        %s279 = ssub.s32 %s24, 1
        // Predicated region
        $region13: #{tpu_custom_call.1} parent=11 // pred_check
          %p280 = pneg %p71
        $region14: #{tpu_custom_call.1} parent=11 // pred_check_branch
          %282 = sbr.rel (%p280) target = $region16
        $region15: #{tpu_custom_call.1} parent=11 // pred_region
          %s284 = ssub.s32 768, 768
          %285 = vsyncadd [#allocation6], %s284
          %s286 = sshll.u32 [#allocation5], 4
          %s287 = int_to_ptr.vmem [resolvable:$true] %s286
          %292 = dma.hbm_to_vmem [thread:$0]  %s1, 768, %s287, [#allocation6], 128, 128, 8
        $region16: #{tpu_custom_call.1} parent=11 // pred_fallthru
          _
        // Predicated region
        $region17: #{tpu_custom_call.1} parent=11 // pred_check
          %p293 = pneg %p92
        $region18: #{tpu_custom_call.1} parent=11 // pred_check_branch
          %295 = sbr.rel (%p293) target = $region20
        $region19: #{tpu_custom_call.1} parent=11 // pred_region
          _
        $region20: #{tpu_custom_call.1} parent=11 // pred_fallthru
          _
        // Predicated region
        $region21: #{tpu_custom_call.1} parent=11 // pred_check
          %p296 = pneg %p113
        $region22: #{tpu_custom_call.1} parent=11 // pred_check_branch
          %298 = sbr.rel (%p296) target = $region24
        $region23: #{tpu_custom_call.1} parent=11 // pred_region
          %s300 = ssub.s32 16, 16
          %301 = vsyncadd [#allocation6], %s300
          %s303 = sshll.u32 [#allocation7], 4
          %s304 = int_to_ptr.vmem [resolvable:$true] %s303
          %306 = dma.hbm_to_vmem [thread:$0]  %s3, 16, %s304, [#allocation6]
        $region24: #{tpu_custom_call.1} parent=11 // pred_fallthru
          _
        // Predicated region
        $region25: #{tpu_custom_call.1} parent=11 // pred_check
          %p307 = pneg %p134
        $region26: #{tpu_custom_call.1} parent=11 // pred_check_branch
          %309 = sbr.rel (%p307) target = $region28
        $region27: #{tpu_custom_call.1} parent=11 // pred_region
          %s311 = ssub.s32 16, 16
          %312 = vsyncadd [#allocation9], %s311
          %s314 = sshll.u32 [#allocation8], 4
          %s315 = int_to_ptr.vmem [resolvable:$true] %s314
          %317 = dma.hbm_to_vmem [thread:$0]  %s4, 16, %s315, [#allocation9]
        $region28: #{tpu_custom_call.1} parent=11 // pred_fallthru
          _
        // Predicated region
        $region29: #{tpu_custom_call.1} parent=11 // pred_check
          %p318 = pneg %p155
        $region30: #{tpu_custom_call.1} parent=11 // pred_check_branch
          %320 = sbr.rel (%p318) target = $region32
        $region31: #{tpu_custom_call.1} parent=11 // pred_region
          _
        $region32: #{tpu_custom_call.1} parent=11 // pred_fallthru
          _
        // Predicated region
        $region33: #{tpu_custom_call.1} parent=11 // pred_check
          %p321 = pneg %p176
        $region34: #{tpu_custom_call.1} parent=11 // pred_check_branch
          %323 = sbr.rel (%p321) target = $region36
        $region35: #{tpu_custom_call.1} parent=11 // pred_region
          %s325 = ssub.s32 128, 128
          %326 = vsyncadd [#allocation9], %s325
          %s328 = sshll.u32 [#allocation10], 4
          %s329 = int_to_ptr.vmem [resolvable:$true] %s328
          %331 = dma.hbm_to_vmem [thread:$0]  %s6, 128, %s329, [#allocation9]
        $region36: #{tpu_custom_call.1} parent=11 // pred_fallthru
          _
        // Predicated region
        $region37: #{tpu_custom_call.1} parent=11 // pred_check
          %p332 = pneg %p197
        $region38: #{tpu_custom_call.1} parent=11 // pred_check_branch
          %334 = sbr.rel (%p332) target = $region40
        $region39: #{tpu_custom_call.1} parent=11 // pred_region
          _
        $region40: #{tpu_custom_call.1} parent=11 // pred_fallthru
          _
        // Predicated region
        $region41: #{tpu_custom_call.1} parent=11 // pred_check
          %p335 = pneg %p218
        $region42: #{tpu_custom_call.1} parent=11 // pred_check_branch
          %337 = sbr.rel (%p335) target = $region44
        $region43: #{tpu_custom_call.1} parent=11 // pred_region
          _
        $region44: #{tpu_custom_call.1} parent=11 // pred_fallthru
          _
        // Predicated region
        $region45: #{tpu_custom_call.1} parent=11 // pred_check
          %p338 = pneg %p239
        $region46: #{tpu_custom_call.1} parent=11 // pred_check_branch
          %340 = sbr.rel (%p338) target = $region48
        $region47: #{tpu_custom_call.1} parent=11 // pred_region
          _
        $region48: #{tpu_custom_call.1} parent=11 // pred_fallthru
          _
      $region12: #{tpu_custom_call.1} parent=5 // pred_fallthru
        _
      %p341 = scmp.lt.s32.totalorder %s24, 2
      // Predicated region
      $region49: #{tpu_custom_call.1} parent=5 // pred_check
        %p342 = pneg %p341
      $region50: #{tpu_custom_call.1} parent=5 // pred_check_branch
        %344 = sbr.rel (%p342) target = $region52
      $region51: #{tpu_custom_call.1} parent=5 // pred_region
        // Predicated region
        $region53: #{tpu_custom_call.1} parent=51 // pred_check
          %p345 = pneg %p44
        $region54: #{tpu_custom_call.1} parent=51 // pred_check_branch
          %347 = sbr.rel (%p345) target = $region56
        $region55: #{tpu_custom_call.1} parent=51 // pred_region
          %s348 = sand.u32 %s34, 1
          %s349 = scalar_lea.sflag [#allocation3], %s348
          %s350 = sand.u32 %s34, 1
          %s351 = smul.addr %s350, 8
          %s352 = scalar_lea.vmem [#allocation2], %s351
          %s354 = ssub.s32 128, 128
          %355 = vsyncadd %s349, %s354
          %s356 = smul.addr %s24, 128
          %s357 = scalar_lea.hbm %s0, %s356
          %s359 = sshll.u32 %s352, 4
          %s360 = int_to_ptr.vmem [resolvable:$true] %s359
          %362 = dma.hbm_to_vmem [thread:$0]  %s357, 128, %s360, %s349
        $region56: #{tpu_custom_call.1} parent=51 // pred_fallthru
          _
      $region52: #{tpu_custom_call.1} parent=5 // pred_fallthru
        _
      %p363 = scmp.le.s32.totalorder 1, %s24
      %p364 = scmp.lt.s32.totalorder %s24, 3
      %p365 = pnand %p363, %p364
      %p366 = pneg %p365
      // Predicated region
      $region57: #{tpu_custom_call.1} parent=5 // pred_check
        _
      $region58: #{tpu_custom_call.1} parent=5 // pred_check_branch
        %368 = sbr.rel (%p365) target = $region60
      $region59: #{tpu_custom_call.1} parent=5 // pred_region
        %s369 = ssub.s32 %s24, 1
        %s370 = sand.u32 %s37, 1
        %s371 = scalar_lea.sflag [#allocation3], %s370
        %s372 = sand.u32 %s37, 1
        %s373 = smul.addr %s372, 8
        %s374 = scalar_lea.vmem [#allocation2], %s373
        // Predicated region
        $region61: #{tpu_custom_call.1} parent=59 // pred_check
          %p375 = pneg %p50
        $region62: #{tpu_custom_call.1} parent=59 // pred_check_branch
          %377 = sbr.rel (%p375) target = $region64
        $region63: #{tpu_custom_call.1} parent=59 // pred_region
          %378 = dma.done %s371, 128
        $region64: #{tpu_custom_call.1} parent=59 // pred_fallthru
          _
        // Predicated region
        $region65: #{tpu_custom_call.1} parent=59 // pred_check
          %p379 = pneg %p71
        $region66: #{tpu_custom_call.1} parent=59 // pred_check_branch
          %381 = sbr.rel (%p379) target = $region68
        $region67: #{tpu_custom_call.1} parent=59 // pred_region
          %382 = dma.done [#allocation6], 768
        $region68: #{tpu_custom_call.1} parent=59 // pred_fallthru
          _
        // Predicated region
        $region69: #{tpu_custom_call.1} parent=59 // pred_check
          %p383 = pneg %p113
        $region70: #{tpu_custom_call.1} parent=59 // pred_check_branch
          %385 = sbr.rel (%p383) target = $region72
        $region71: #{tpu_custom_call.1} parent=59 // pred_region
          %386 = dma.done [#allocation6], 16
        $region72: #{tpu_custom_call.1} parent=59 // pred_fallthru
          _
        // Predicated region
        $region73: #{tpu_custom_call.1} parent=59 // pred_check
          %p387 = pneg %p134
        $region74: #{tpu_custom_call.1} parent=59 // pred_check_branch
          %389 = sbr.rel (%p387) target = $region76
        $region75: #{tpu_custom_call.1} parent=59 // pred_region
          %390 = dma.done [#allocation9], 16
        $region76: #{tpu_custom_call.1} parent=59 // pred_fallthru
          _
        // Predicated region
        $region77: #{tpu_custom_call.1} parent=59 // pred_check
          %p391 = pneg %p176
        $region78: #{tpu_custom_call.1} parent=59 // pred_check_branch
          %393 = sbr.rel (%p391) target = $region80
        $region79: #{tpu_custom_call.1} parent=59 // pred_region
          %394 = dma.done [#allocation9], 128
        $region80: #{tpu_custom_call.1} parent=59 // pred_fallthru
          _
        %s395 = sand.u32 %s37, 1
        %s396 = scalar_lea.sflag [#allocation3], %s395
        %s397 = sand.u32 %s37, 1
        %s398 = smul.addr %s397, 8
        %s399 = scalar_lea.vmem [#allocation2], %s398
        %p400 = pneg %p50
        %p401 = pneg %p47
        %p402 = pneg %p71
        %p403 = pneg %p68
        %p404 = pneg %p92
        %p405 = pneg %p89
        %p406 = pneg %p113
        %p407 = pneg %p110
        %p408 = pneg %p134
        %p409 = pneg %p131
        %p410 = pneg %p155
        %p411 = pneg %p152
        %p412 = pneg %p176
        %p413 = pneg %p173
        %p414 = pneg %p197
        %p415 = pneg %p194
        %p416 = pneg %p218
        %p417 = pneg %p215
        %p418 = pneg %p239
        %p419 = pneg %p236
        %p420 = pneg %p265
        %p421 = pneg %p262
        %s422 = sand.u32 %s252, 1
        %s423 = scalar_lea.sflag [#allocation4], %s422
        %s424 = sand.u32 %s252, 1
        %s425 = smul.addr %s424, 8
        %s426 = scalar_lea.vmem [#allocation11], %s425
        %v427 = vld [vmem:[#allocation5] sm:$0xff]
        %s428 = scalar_lea.vmem [#allocation5], 8
        %v429 = vld [vmem:[%s428] sm:$0xff]
        %s430 = scalar_lea.vmem [#allocation5], 16
        %v431 = vld [vmem:[%s430] sm:$0xff]
        %s432 = scalar_lea.vmem [#allocation5], 24
        %v433 = vld [vmem:[%s432] sm:$0xff]
        %s434 = scalar_lea.vmem [#allocation5], 32
        %v435 = vld [vmem:[%s434] sm:$0xff]
        %s436 = scalar_lea.vmem [#allocation5], 40
        %v437 = vld [vmem:[%s436] sm:$0xff]
        %v438 = vld [vmem:[%s2] sm:$0x1]
        %s439 = scalar_lea.vmem %s2, 1
        %v440 = vld [vmem:[%s439] sm:$0x1]
        %v441 = vld [vmem:[#allocation7] sm:$0x1]
        %v442 = vld [vmem:[#allocation8] sm:$0x1]
        %v443 = vld [vmem:[%s5] sm:$0xff]
        %v444 = vld [vmem:[%s5 + $0x8] sm:$0xff]
        %v445 = vld [vmem:[#allocation10] sm:$0xff]
        %v446 = vld [vmem:[%s7] sm:$0x1]
        %v447 = vld [vmem:[%s8] sm:$0x1]
        %v448 = vld [vmem:[%s9] sm:$0x1]
        %v449 = vld [vmem:[%s374] sm:$0xff]
        %451 = vrot.lane.b32.xlu0 %v449, 120
        %v452 = vpop.permute.xlu0 %451
        %vm453 = vcmask 64512
        %v454 = vsel %vm453, %v452, 0
        %456 = vmatprep.subr.mxu0 0.0
        %457 = vmatpush1.msra.mxu0 %v427
        %458 = vmatprep.subr.mxu0 0.0
        %459 = vmatpush1.msra.mxu0 0.0
        %460 = vmatprep.subr.mxu0 0.0
        %461 = vmatpush1.msra.mxu0 0.0
        %462 = vmatprep.subr.mxu0 0.0
        %463 = vmatpush1.msra.mxu0 0.0
        %464 = vmatprep.subr.mxu0 0.0
        %465 = vmatpush1.msra.mxu0 0.0
        %466 = vmatprep.subr.mxu0 0.0
        %467 = vmatpush1.msra.mxu0 0.0
        %468 = vmatprep.subr.mxu0 0.0
        %469 = vmatpush1.msra.mxu0 0.0
        %470 = vmatprep.subr.mxu0 0.0
        %471 = vmatpush1.msra.mxu0 0.0
        %472 = vmatprep.subr.mxu0 0.0
        %473 = vmatpush1.msra.mxu0 0.0
        %474 = vmatprep.subr.mxu0 0.0
        %475 = vmatpush1.msra.mxu0 0.0
        %476 = vmatprep.subr.mxu0 0.0
        %477 = vmatpush1.msra.mxu0 0.0
        %478 = vmatprep.subr.mxu0 0.0
        %479 = vmatpush1.msra.mxu0 0.0
        %480 = vmatprep.subr.mxu0 0.0
        %481 = vmatpush1.msra.mxu0 0.0
        %482 = vmatprep.subr.mxu0 0.0
        %483 = vmatpush1.msra.mxu0 0.0
        %484 = vmatprep.subr.mxu0 0.0
        %485 = vmatpush1.msra.mxu0 0.0
        %486 = vmatprep.subr.mxu0 0.0
        %487 = vmatpush1.msra.mxu0 0.0
        %488 = vmatprep.subr.mxu0 0.0
        %489 = vmatpush1.msra.mxu0 0.0
        %490 = vmatprep.subr.mxu0 0.0
        %491 = vmatpush1.msra.mxu0 0.0
        %492 = vmatprep.subr.mxu0 0.0
        %493 = vmatpush1.msra.mxu0 0.0
        %494 = vmatprep.subr.mxu0 0.0
        %495 = vmatpush1.msra.mxu0 0.0
        %496 = vmatprep.subr.mxu0 0.0
        %497 = vmatpush1.msra.mxu0 0.0
        %498 = vmatprep.subr.mxu0 0.0
        %499 = vmatpush1.msra.mxu0 0.0
        %500 = vmatprep.subr.mxu0 0.0
        %501 = vmatpush1.msra.mxu0 0.0
        %502 = vmatprep.subr.mxu0 0.0
        %503 = vmatpush1.msra.mxu0 0.0
        %504 = vmatprep.subr.mxu0 0.0
        %505 = vmatpush1.msra.mxu0 0.0
        %506 = vmatprep.subr.mxu0 0.0
        %507 = vmatpush1.msra.mxu0 0.0
        %508 = vmatprep.subr.mxu0 0.0
        %509 = vmatpush1.msra.mxu0 0.0
        %510 = vmatprep.subr.mxu0 0.0
        %511 = vmatpush1.msra.mxu0 0.0
        %512 = vmatprep.subr.mxu0 0.0
        %513 = vmatpush1.msra.mxu0 0.0
        %514 = vmatprep.subr.mxu0 0.0
        %515 = vmatpush1.msra.mxu0 0.0
        %516 = vmatprep.subr.mxu0 0.0
        %517 = vmatpush1.msra.mxu0 0.0
        %518 = vmatprep.subr.mxu0 0.0
        %519 = vmatpush1.msra.mxu0 0.0
        %520 = vmatprep.mubr.f32.mxu0 0.0
        %521 = vmatmul.mubr.f32.gmra.mrb[0].mxu0 %v454
        %v522 = vpop.f32.mrb[0].mxu0
        %v523 = vadd.f32 0.0, %v522
        %v524 = vpop.f32.mrb[0].mxu0
        %525 = vdwg.mxu0
        %526 = vmatprep.subr.mxu0 0.0
        %527 = vmatpush1.msra.mxu0 %v429
        %528 = vmatprep.subr.mxu0 0.0
        %529 = vmatpush1.msra.mxu0 0.0
        %530 = vmatprep.subr.mxu0 0.0
        %531 = vmatpush1.msra.mxu0 0.0
        %532 = vmatprep.subr.mxu0 0.0
        %533 = vmatpush1.msra.mxu0 0.0
        %534 = vmatprep.subr.mxu0 0.0
        %535 = vmatpush1.msra.mxu0 0.0
        %536 = vmatprep.subr.mxu0 0.0
        %537 = vmatpush1.msra.mxu0 0.0
        %538 = vmatprep.subr.mxu0 0.0
        %539 = vmatpush1.msra.mxu0 0.0
        %540 = vmatprep.subr.mxu0 0.0
        %541 = vmatpush1.msra.mxu0 0.0
        %542 = vmatprep.subr.mxu0 0.0
        %543 = vmatpush1.msra.mxu0 0.0
        %544 = vmatprep.subr.mxu0 0.0
        %545 = vmatpush1.msra.mxu0 0.0
        %546 = vmatprep.subr.mxu0 0.0
        %547 = vmatpush1.msra.mxu0 0.0
        %548 = vmatprep.subr.mxu0 0.0
        %549 = vmatpush1.msra.mxu0 0.0
        %550 = vmatprep.subr.mxu0 0.0
        %551 = vmatpush1.msra.mxu0 0.0
        %552 = vmatprep.subr.mxu0 0.0
        %553 = vmatpush1.msra.mxu0 0.0
        %554 = vmatprep.subr.mxu0 0.0
        %555 = vmatpush1.msra.mxu0 0.0
        %556 = vmatprep.subr.mxu0 0.0
        %557 = vmatpush1.msra.mxu0 0.0
        %558 = vmatprep.subr.mxu0 0.0
        %559 = vmatpush1.msra.mxu0 0.0
        %560 = vmatprep.subr.mxu0 0.0
        %561 = vmatpush1.msra.mxu0 0.0
        %562 = vmatprep.subr.mxu0 0.0
        %563 = vmatpush1.msra.mxu0 0.0
        %564 = vmatprep.subr.mxu0 0.0
        %565 = vmatpush1.msra.mxu0 0.0
        %566 = vmatprep.subr.mxu0 0.0
        %567 = vmatpush1.msra.mxu0 0.0
        %568 = vmatprep.subr.mxu0 0.0
        %569 = vmatpush1.msra.mxu0 0.0
        %570 = vmatprep.subr.mxu0 0.0
        %571 = vmatpush1.msra.mxu0 0.0
        %572 = vmatprep.subr.mxu0 0.0
        %573 = vmatpush1.msra.mxu0 0.0
        %574 = vmatprep.subr.mxu0 0.0
        %575 = vmatpush1.msra.mxu0 0.0
        %576 = vmatprep.subr.mxu0 0.0
        %577 = vmatpush1.msra.mxu0 0.0
        %578 = vmatprep.subr.mxu0 0.0
        %579 = vmatpush1.msra.mxu0 0.0
        %580 = vmatprep.subr.mxu0 0.0
        %581 = vmatpush1.msra.mxu0 0.0
        %582 = vmatprep.subr.mxu0 0.0
        %583 = vmatpush1.msra.mxu0 0.0
        %584 = vmatprep.subr.mxu0 0.0
        %585 = vmatpush1.msra.mxu0 0.0
        %586 = vmatprep.subr.mxu0 0.0
        %587 = vmatpush1.msra.mxu0 0.0
        %588 = vmatprep.subr.mxu0 0.0
        %589 = vmatpush1.msra.mxu0 0.0
        %590 = vmatprep.mubr.f32.mxu0 0.0
        %591 = vmatmul.mubr.f32.gmra.mrb[0].mxu0 %v454
        %v592 = vpop.f32.mrb[0].mxu0
        %v593 = vadd.f32 0.0, %v592
        %v594 = vpop.f32.mrb[0].mxu0
        %595 = vdwg.mxu0
        %596 = vmatprep.subr.mxu0 0.0
        %597 = vmatpush1.msra.mxu0 %v431
        %598 = vmatprep.subr.mxu0 0.0
        %599 = vmatpush1.msra.mxu0 0.0
        %600 = vmatprep.subr.mxu0 0.0
        %601 = vmatpush1.msra.mxu0 0.0
        %602 = vmatprep.subr.mxu0 0.0
        %603 = vmatpush1.msra.mxu0 0.0
        %604 = vmatprep.subr.mxu0 0.0
        %605 = vmatpush1.msra.mxu0 0.0
        %606 = vmatprep.subr.mxu0 0.0
        %607 = vmatpush1.msra.mxu0 0.0
        %608 = vmatprep.subr.mxu0 0.0
        %609 = vmatpush1.msra.mxu0 0.0
        %610 = vmatprep.subr.mxu0 0.0
        %611 = vmatpush1.msra.mxu0 0.0
        %612 = vmatprep.subr.mxu0 0.0
        %613 = vmatpush1.msra.mxu0 0.0
        %614 = vmatprep.subr.mxu0 0.0
        %615 = vmatpush1.msra.mxu0 0.0
        %616 = vmatprep.subr.mxu0 0.0
        %617 = vmatpush1.msra.mxu0 0.0
        %618 = vmatprep.subr.mxu0 0.0
        %619 = vmatpush1.msra.mxu0 0.0
        %620 = vmatprep.subr.mxu0 0.0
        %621 = vmatpush1.msra.mxu0 0.0
        %622 = vmatprep.subr.mxu0 0.0
        %623 = vmatpush1.msra.mxu0 0.0
        %624 = vmatprep.subr.mxu0 0.0
        %625 = vmatpush1.msra.mxu0 0.0
        %626 = vmatprep.subr.mxu0 0.0
        %627 = vmatpush1.msra.mxu0 0.0
        %628 = vmatprep.subr.mxu0 0.0
        %629 = vmatpush1.msra.mxu0 0.0
        %630 = vmatprep.subr.mxu0 0.0
        %631 = vmatpush1.msra.mxu0 0.0
        %632 = vmatprep.subr.mxu0 0.0
        %633 = vmatpush1.msra.mxu0 0.0
        %634 = vmatprep.subr.mxu0 0.0
        %635 = vmatpush1.msra.mxu0 0.0
        %636 = vmatprep.subr.mxu0 0.0
        %637 = vmatpush1.msra.mxu0 0.0
        %638 = vmatprep.subr.mxu0 0.0
        %639 = vmatpush1.msra.mxu0 0.0
        %640 = vmatprep.subr.mxu0 0.0
        %641 = vmatpush1.msra.mxu0 0.0
        %642 = vmatprep.subr.mxu0 0.0
        %643 = vmatpush1.msra.mxu0 0.0
        %644 = vmatprep.subr.mxu0 0.0
        %645 = vmatpush1.msra.mxu0 0.0
        %646 = vmatprep.subr.mxu0 0.0
        %647 = vmatpush1.msra.mxu0 0.0
        %648 = vmatprep.subr.mxu0 0.0
        %649 = vmatpush1.msra.mxu0 0.0
        %650 = vmatprep.subr.mxu0 0.0
        %651 = vmatpush1.msra.mxu0 0.0
        %652 = vmatprep.subr.mxu0 0.0
        %653 = vmatpush1.msra.mxu0 0.0
        %654 = vmatprep.subr.mxu0 0.0
        %655 = vmatpush1.msra.mxu0 0.0
        %656 = vmatprep.subr.mxu0 0.0
        %657 = vmatpush1.msra.mxu0 0.0
        %658 = vmatprep.subr.mxu0 0.0
        %659 = vmatpush1.msra.mxu0 0.0
        %660 = vmatprep.mubr.f32.mxu0 0.0
        %661 = vmatmul.mubr.f32.gmra.mrb[0].mxu0 %v454
        %v662 = vpop.f32.mrb[0].mxu0
        %v663 = vadd.f32 0.0, %v662
        %v664 = vpop.f32.mrb[0].mxu0
        %665 = vdwg.mxu0
        %v667 = vrot.slane %v523, 7
        %vm669 = vcmask 1040384
        %v670 = vsel %vm669, %v667, %v667
        %v671 = vadd.f32 %v670, %v593
        %v673 = vrot.slane %v663, 1
        %vm675 = vcmask 1046528
        %v676 = vsel %vm675, %v673, %v673
        %v677 = vadd.f32 %v671, %v676
        %v679 = vlaneseq
        %v680 = vshrl.u32 %v679, 7
        %v681 = vsub.s32 0, %v680
        %v682 = vrot.slane %v438, %v681
        %v684 = vadd.f32 %v677, %v682
        %v685 = vsel %vm453, %v684, 0.0
        %686 = vadd.xlane.f32.xlu0 %v685
        %v687 = vpop.xlane.xlu0 %686
        %v688 = vrcp.pop 8.0
        %v689 = vmul.f32 %v687, %v688
        %v690 = vmul.f32 %v684, %v684
        %v691 = vsel %vm453, %v690, 0.0
        %692 = vadd.xlane.f32.xlu0 %v691
        %v693 = vpop.xlane.xlu0 %692
        %v694 = vmul.f32 %v693, %v688
        %v695 = vmul.f32 %v689, %v689
        %v696 = vsub.f32 %v694, %v695
        %v697 = vmax.f32 %v696, 0.0
        %v698 = vsub.f32 %v684, %v689
        %v699 = vadd.f32 %v697, 1e-05
        %v700 = vrsqrt.pop %v699
        %v701 = vmul.f32 %v698, %v700
        %v703 = vlaneseq
        %v704 = vshrl.u32 %v703, 7
        %v705 = vsub.s32 0, %v704
        %v706 = vrot.slane %v441, %v705
        %v708 = vmul.f32 %v701, %v706
        %v710 = vlaneseq
        %v711 = vshrl.u32 %v710, 7
        %v712 = vsub.s32 0, %v711
        %v713 = vrot.slane %v442, %v712
        %v715 = vadd.f32 %v708, %v713
        %v716 = vmul.f32 %v715, 0.5
        %v717 = vmul.f32 %v715, 0.70710677
        %vm718 = vcmp.ge.f32.partialorder %v717, 0.0
        %v719 = vsel %vm718, 1.0, -1.0
        %v720 = vand.u32 2147483647, %v717
        %v721 = vmul.f32 %v720, 0.3275911
        %v722 = vadd.f32 %v721, 1.0
        %v723 = vrcp.pop %v722
        %v724 = vmul.f32 %v722, %v723
        %v725 = vsub.f32 2.0, %v724
        %v726 = vmul.f32 %v723, %v725
        %v727 = vmul.f32 %v726, 1.0614054
        %v728 = vadd.f32 %v727, -1.4531521
        %v729 = vmul.f32 %v726, %v728
        %v730 = vadd.f32 %v729, 1.4214138
        %v731 = vmul.f32 %v726, %v730
        %v732 = vadd.f32 %v731, -0.28449672
        %v733 = vmul.f32 %v726, %v732
        %v734 = vadd.f32 %v733, 0.2548296
        %v735 = vmul.f32 %v726, %v734
        %v736 = vsub.f32 0.0, %v720
        %v737 = vmul.f32 %v736, %v720
        %v738 = vmul.f32 %v737, 1.442695
        %v739 = vpow.pop %v738
        %v740 = vmul.f32 %v735, %v739
        %v741 = vsub.f32 1.0, %v740
        %v742 = vmul.f32 %v719, %v741
        %v743 = vadd.f32 %v742, 1.0
        %v744 = vmul.f32 %v716, %v743
        %v746 = vsel %vm453, %v744, 0
        %748 = vmatprep.subr.mxu0 0.0
        %749 = vmatpush1.msra.mxu0 %v433
        %750 = vmatprep.subr.mxu0 0.0
        %751 = vmatpush1.msra.mxu0 0.0
        %752 = vmatprep.subr.mxu0 0.0
        %753 = vmatpush1.msra.mxu0 0.0
        %754 = vmatprep.subr.mxu0 0.0
        %755 = vmatpush1.msra.mxu0 0.0
        %756 = vmatprep.subr.mxu0 0.0
        %757 = vmatpush1.msra.mxu0 0.0
        %758 = vmatprep.subr.mxu0 0.0
        %759 = vmatpush1.msra.mxu0 0.0
        %760 = vmatprep.subr.mxu0 0.0
        %761 = vmatpush1.msra.mxu0 0.0
        %762 = vmatprep.subr.mxu0 0.0
        %763 = vmatpush1.msra.mxu0 0.0
        %764 = vmatprep.subr.mxu0 0.0
        %765 = vmatpush1.msra.mxu0 0.0
        %766 = vmatprep.subr.mxu0 0.0
        %767 = vmatpush1.msra.mxu0 0.0
        %768 = vmatprep.subr.mxu0 0.0
        %769 = vmatpush1.msra.mxu0 0.0
        %770 = vmatprep.subr.mxu0 0.0
        %771 = vmatpush1.msra.mxu0 0.0
        %772 = vmatprep.subr.mxu0 0.0
        %773 = vmatpush1.msra.mxu0 0.0
        %774 = vmatprep.subr.mxu0 0.0
        %775 = vmatpush1.msra.mxu0 0.0
        %776 = vmatprep.subr.mxu0 0.0
        %777 = vmatpush1.msra.mxu0 0.0
        %778 = vmatprep.subr.mxu0 0.0
        %779 = vmatpush1.msra.mxu0 0.0
        %780 = vmatprep.subr.mxu0 0.0
        %781 = vmatpush1.msra.mxu0 0.0
        %782 = vmatprep.subr.mxu0 0.0
        %783 = vmatpush1.msra.mxu0 0.0
        %784 = vmatprep.subr.mxu0 0.0
        %785 = vmatpush1.msra.mxu0 0.0
        %786 = vmatprep.subr.mxu0 0.0
        %787 = vmatpush1.msra.mxu0 0.0
        %788 = vmatprep.subr.mxu0 0.0
        %789 = vmatpush1.msra.mxu0 0.0
        %790 = vmatprep.subr.mxu0 0.0
        %791 = vmatpush1.msra.mxu0 0.0
        %792 = vmatprep.subr.mxu0 0.0
        %793 = vmatpush1.msra.mxu0 0.0
        %794 = vmatprep.subr.mxu0 0.0
        %795 = vmatpush1.msra.mxu0 0.0
        %796 = vmatprep.subr.mxu0 0.0
        %797 = vmatpush1.msra.mxu0 0.0
        %798 = vmatprep.subr.mxu0 0.0
        %799 = vmatpush1.msra.mxu0 0.0
        %800 = vmatprep.subr.mxu0 0.0
        %801 = vmatpush1.msra.mxu0 0.0
        %802 = vmatprep.subr.mxu0 0.0
        %803 = vmatpush1.msra.mxu0 0.0
        %804 = vmatprep.subr.mxu0 0.0
        %805 = vmatpush1.msra.mxu0 0.0
        %806 = vmatprep.subr.mxu0 0.0
        %807 = vmatpush1.msra.mxu0 0.0
        %808 = vmatprep.subr.mxu0 0.0
        %809 = vmatpush1.msra.mxu0 0.0
        %810 = vmatprep.subr.mxu0 0.0
        %811 = vmatpush1.msra.mxu0 0.0
        %812 = vmatprep.mubr.f32.mxu0 0.0
        %813 = vmatmul.mubr.f32.gmra.mrb[0].mxu0 %v746
        %v814 = vpop.f32.mrb[0].mxu0
        %v815 = vadd.f32 0.0, %v814
        %v816 = vpop.f32.mrb[0].mxu0
        %817 = vdwg.mxu0
        %818 = vmatprep.subr.mxu0 0.0
        %819 = vmatpush1.msra.mxu0 %v435
        %820 = vmatprep.subr.mxu0 0.0
        %821 = vmatpush1.msra.mxu0 0.0
        %822 = vmatprep.subr.mxu0 0.0
        %823 = vmatpush1.msra.mxu0 0.0
        %824 = vmatprep.subr.mxu0 0.0
        %825 = vmatpush1.msra.mxu0 0.0
        %826 = vmatprep.subr.mxu0 0.0
        %827 = vmatpush1.msra.mxu0 0.0
        %828 = vmatprep.subr.mxu0 0.0
        %829 = vmatpush1.msra.mxu0 0.0
        %830 = vmatprep.subr.mxu0 0.0
        %831 = vmatpush1.msra.mxu0 0.0
        %832 = vmatprep.subr.mxu0 0.0
        %833 = vmatpush1.msra.mxu0 0.0
        %834 = vmatprep.subr.mxu0 0.0
        %835 = vmatpush1.msra.mxu0 0.0
        %836 = vmatprep.subr.mxu0 0.0
        %837 = vmatpush1.msra.mxu0 0.0
        %838 = vmatprep.subr.mxu0 0.0
        %839 = vmatpush1.msra.mxu0 0.0
        %840 = vmatprep.subr.mxu0 0.0
        %841 = vmatpush1.msra.mxu0 0.0
        %842 = vmatprep.subr.mxu0 0.0
        %843 = vmatpush1.msra.mxu0 0.0
        %844 = vmatprep.subr.mxu0 0.0
        %845 = vmatpush1.msra.mxu0 0.0
        %846 = vmatprep.subr.mxu0 0.0
        %847 = vmatpush1.msra.mxu0 0.0
        %848 = vmatprep.subr.mxu0 0.0
        %849 = vmatpush1.msra.mxu0 0.0
        %850 = vmatprep.subr.mxu0 0.0
        %851 = vmatpush1.msra.mxu0 0.0
        %852 = vmatprep.subr.mxu0 0.0
        %853 = vmatpush1.msra.mxu0 0.0
        %854 = vmatprep.subr.mxu0 0.0
        %855 = vmatpush1.msra.mxu0 0.0
        %856 = vmatprep.subr.mxu0 0.0
        %857 = vmatpush1.msra.mxu0 0.0
        %858 = vmatprep.subr.mxu0 0.0
        %859 = vmatpush1.msra.mxu0 0.0
        %860 = vmatprep.subr.mxu0 0.0
        %861 = vmatpush1.msra.mxu0 0.0
        %862 = vmatprep.subr.mxu0 0.0
        %863 = vmatpush1.msra.mxu0 0.0
        %864 = vmatprep.subr.mxu0 0.0
        %865 = vmatpush1.msra.mxu0 0.0
        %866 = vmatprep.subr.mxu0 0.0
        %867 = vmatpush1.msra.mxu0 0.0
        %868 = vmatprep.subr.mxu0 0.0
        %869 = vmatpush1.msra.mxu0 0.0
        %870 = vmatprep.subr.mxu0 0.0
        %871 = vmatpush1.msra.mxu0 0.0
        %872 = vmatprep.subr.mxu0 0.0
        %873 = vmatpush1.msra.mxu0 0.0
        %874 = vmatprep.subr.mxu0 0.0
        %875 = vmatpush1.msra.mxu0 0.0
        %876 = vmatprep.subr.mxu0 0.0
        %877 = vmatpush1.msra.mxu0 0.0
        %878 = vmatprep.subr.mxu0 0.0
        %879 = vmatpush1.msra.mxu0 0.0
        %880 = vmatprep.subr.mxu0 0.0
        %881 = vmatpush1.msra.mxu0 0.0
        %882 = vmatprep.mubr.f32.mxu0 0.0
        %883 = vmatmul.mubr.f32.gmra.mrb[0].mxu0 %v746
        %v884 = vpop.f32.mrb[0].mxu0
        %v885 = vadd.f32 0.0, %v884
        %v886 = vpop.f32.mrb[0].mxu0
        %887 = vdwg.mxu0
        %888 = vmatprep.subr.mxu0 0.0
        %889 = vmatpush1.msra.mxu0 %v437
        %890 = vmatprep.subr.mxu0 0.0
        %891 = vmatpush1.msra.mxu0 0.0
        %892 = vmatprep.subr.mxu0 0.0
        %893 = vmatpush1.msra.mxu0 0.0
        %894 = vmatprep.subr.mxu0 0.0
        %895 = vmatpush1.msra.mxu0 0.0
        %896 = vmatprep.subr.mxu0 0.0
        %897 = vmatpush1.msra.mxu0 0.0
        %898 = vmatprep.subr.mxu0 0.0
        %899 = vmatpush1.msra.mxu0 0.0
        %900 = vmatprep.subr.mxu0 0.0
        %901 = vmatpush1.msra.mxu0 0.0
        %902 = vmatprep.subr.mxu0 0.0
        %903 = vmatpush1.msra.mxu0 0.0
        %904 = vmatprep.subr.mxu0 0.0
        %905 = vmatpush1.msra.mxu0 0.0
        %906 = vmatprep.subr.mxu0 0.0
        %907 = vmatpush1.msra.mxu0 0.0
        %908 = vmatprep.subr.mxu0 0.0
        %909 = vmatpush1.msra.mxu0 0.0
        %910 = vmatprep.subr.mxu0 0.0
        %911 = vmatpush1.msra.mxu0 0.0
        %912 = vmatprep.subr.mxu0 0.0
        %913 = vmatpush1.msra.mxu0 0.0
        %914 = vmatprep.subr.mxu0 0.0
        %915 = vmatpush1.msra.mxu0 0.0
        %916 = vmatprep.subr.mxu0 0.0
        %917 = vmatpush1.msra.mxu0 0.0
        %918 = vmatprep.subr.mxu0 0.0
        %919 = vmatpush1.msra.mxu0 0.0
        %920 = vmatprep.subr.mxu0 0.0
        %921 = vmatpush1.msra.mxu0 0.0
        %922 = vmatprep.subr.mxu0 0.0
        %923 = vmatpush1.msra.mxu0 0.0
        %924 = vmatprep.subr.mxu0 0.0
        %925 = vmatpush1.msra.mxu0 0.0
        %926 = vmatprep.subr.mxu0 0.0
        %927 = vmatpush1.msra.mxu0 0.0
        %928 = vmatprep.subr.mxu0 0.0
        %929 = vmatpush1.msra.mxu0 0.0
        %930 = vmatprep.subr.mxu0 0.0
        %931 = vmatpush1.msra.mxu0 0.0
        %932 = vmatprep.subr.mxu0 0.0
        %933 = vmatpush1.msra.mxu0 0.0
        %934 = vmatprep.subr.mxu0 0.0
        %935 = vmatpush1.msra.mxu0 0.0
        %936 = vmatprep.subr.mxu0 0.0
        %937 = vmatpush1.msra.mxu0 0.0
        %938 = vmatprep.subr.mxu0 0.0
        %939 = vmatpush1.msra.mxu0 0.0
        %940 = vmatprep.subr.mxu0 0.0
        %941 = vmatpush1.msra.mxu0 0.0
        %942 = vmatprep.subr.mxu0 0.0
        %943 = vmatpush1.msra.mxu0 0.0
        %944 = vmatprep.subr.mxu0 0.0
        %945 = vmatpush1.msra.mxu0 0.0
        %946 = vmatprep.subr.mxu0 0.0
        %947 = vmatpush1.msra.mxu0 0.0
        %948 = vmatprep.subr.mxu0 0.0
        %949 = vmatpush1.msra.mxu0 0.0
        %950 = vmatprep.subr.mxu0 0.0
        %951 = vmatpush1.msra.mxu0 0.0
        %952 = vmatprep.mubr.f32.mxu0 0.0
        %953 = vmatmul.mubr.f32.gmra.mrb[0].mxu0 %v746
        %v954 = vpop.f32.mrb[0].mxu0
        %v955 = vadd.f32 0.0, %v954
        %v956 = vpop.f32.mrb[0].mxu0
        %957 = vdwg.mxu0
        %v959 = vrot.slane %v815, 7
        %v961 = vsel %vm669, %v959, %v959
        %v962 = vadd.f32 %v961, %v885
        %v964 = vrot.slane %v955, 1
        %v966 = vsel %vm675, %v964, %v964
        %v967 = vadd.f32 %v962, %v966
        %v969 = vlaneseq
        %v970 = vshrl.u32 %v969, 7
        %v971 = vsub.s32 0, %v970
        %v972 = vrot.slane %v440, %v971
        %v974 = vadd.f32 %v967, %v972
        %v975 = vsel %vm453, %v974, 0.0
        %976 = vadd.xlane.f32.xlu0 %v975
        %v977 = vpop.xlane.xlu0 %976
        %v978 = vmul.f32 %v977, %v688
        %v979 = vmul.f32 %v974, %v974
        %v980 = vsel %vm453, %v979, 0.0
        %981 = vadd.xlane.f32.xlu0 %v980
        %v982 = vpop.xlane.xlu0 %981
        %v983 = vmul.f32 %v982, %v688
        %v984 = vmul.f32 %v978, %v978
        %v985 = vsub.f32 %v983, %v984
        %v986 = vmax.f32 %v985, 0.0
        %v987 = vsub.f32 %v974, %v978
        %v988 = vadd.f32 %v986, 1e-05
        %v989 = vrsqrt.pop %v988
        %v990 = vmul.f32 %v987, %v989
        %v991 = vmul.f32 %v990, %v706
        %v992 = vadd.f32 %v991, %v713
        %v993 = vmul.f32 %v992, 0.5
        %v994 = vmul.f32 %v992, 0.70710677
        %vm995 = vcmp.ge.f32.partialorder %v994, 0.0
        %v996 = vsel %vm995, 1.0, -1.0
        %v997 = vand.u32 2147483647, %v994
        %v998 = vmul.f32 %v997, 0.3275911
        %v999 = vadd.f32 %v998, 1.0
        %v1000 = vrcp.pop %v999
        %v1001 = vmul.f32 %v999, %v1000
        %v1002 = vsub.f32 2.0, %v1001
        %v1003 = vmul.f32 %v1000, %v1002
        %v1004 = vmul.f32 %v1003, 1.0614054
        %v1005 = vadd.f32 %v1004, -1.4531521
        %v1006 = vmul.f32 %v1003, %v1005
        %v1007 = vadd.f32 %v1006, 1.4214138
        %v1008 = vmul.f32 %v1003, %v1007
        %v1009 = vadd.f32 %v1008, -0.28449672
        %v1010 = vmul.f32 %v1003, %v1009
        %v1011 = vadd.f32 %v1010, 0.2548296
        %v1012 = vmul.f32 %v1003, %v1011
        %v1013 = vsub.f32 0.0, %v997
        %v1014 = vmul.f32 %v1013, %v997
        %v1015 = vmul.f32 %v1014, 1.442695
        %v1016 = vpow.pop %v1015
        %v1017 = vmul.f32 %v1012, %v1016
        %v1018 = vsub.f32 1.0, %v1017
        %v1019 = vmul.f32 %v996, %v1018
        %v1020 = vadd.f32 %v1019, 1.0
        %v1021 = vmul.f32 %v993, %v1020
        %v1023 = vsel %vm453, %v1021, 0
        %1025 = vmatprep.subr.mxu0 0.0
        %1026 = vmatpush1.msra.mxu0 %v445
        %1027 = vmatprep.subr.mxu0 0.0
        %1028 = vmatpush1.msra.mxu0 0.0
        %1029 = vmatprep.subr.mxu0 0.0
        %1030 = vmatpush1.msra.mxu0 0.0
        %1031 = vmatprep.subr.mxu0 0.0
        %1032 = vmatpush1.msra.mxu0 0.0
        %1033 = vmatprep.subr.mxu0 0.0
        %1034 = vmatpush1.msra.mxu0 0.0
        %1035 = vmatprep.subr.mxu0 0.0
        %1036 = vmatpush1.msra.mxu0 0.0
        %1037 = vmatprep.subr.mxu0 0.0
        %1038 = vmatpush1.msra.mxu0 0.0
        %1039 = vmatprep.subr.mxu0 0.0
        %1040 = vmatpush1.msra.mxu0 0.0
        %1041 = vmatprep.subr.mxu0 0.0
        %1042 = vmatpush1.msra.mxu0 0.0
        %1043 = vmatprep.subr.mxu0 0.0
        %1044 = vmatpush1.msra.mxu0 0.0
        %1045 = vmatprep.subr.mxu0 0.0
        %1046 = vmatpush1.msra.mxu0 0.0
        %1047 = vmatprep.subr.mxu0 0.0
        %1048 = vmatpush1.msra.mxu0 0.0
        %1049 = vmatprep.subr.mxu0 0.0
        %1050 = vmatpush1.msra.mxu0 0.0
        %1051 = vmatprep.subr.mxu0 0.0
        %1052 = vmatpush1.msra.mxu0 0.0
        %1053 = vmatprep.subr.mxu0 0.0
        %1054 = vmatpush1.msra.mxu0 0.0
        %1055 = vmatprep.subr.mxu0 0.0
        %1056 = vmatpush1.msra.mxu0 0.0
        %1057 = vmatprep.subr.mxu0 0.0
        %1058 = vmatpush1.msra.mxu0 0.0
        %1059 = vmatprep.subr.mxu0 0.0
        %1060 = vmatpush1.msra.mxu0 0.0
        %1061 = vmatprep.subr.mxu0 0.0
        %1062 = vmatpush1.msra.mxu0 0.0
        %1063 = vmatprep.subr.mxu0 0.0
        %1064 = vmatpush1.msra.mxu0 0.0
        %1065 = vmatprep.subr.mxu0 0.0
        %1066 = vmatpush1.msra.mxu0 0.0
        %1067 = vmatprep.subr.mxu0 0.0
        %1068 = vmatpush1.msra.mxu0 0.0
        %1069 = vmatprep.subr.mxu0 0.0
        %1070 = vmatpush1.msra.mxu0 0.0
        %1071 = vmatprep.subr.mxu0 0.0
        %1072 = vmatpush1.msra.mxu0 0.0
        %1073 = vmatprep.subr.mxu0 0.0
        %1074 = vmatpush1.msra.mxu0 0.0
        %1075 = vmatprep.subr.mxu0 0.0
        %1076 = vmatpush1.msra.mxu0 0.0
        %1077 = vmatprep.subr.mxu0 0.0
        %1078 = vmatpush1.msra.mxu0 0.0
        %1079 = vmatprep.subr.mxu0 0.0
        %1080 = vmatpush1.msra.mxu0 0.0
        %1081 = vmatprep.subr.mxu0 0.0
        %1082 = vmatpush1.msra.mxu0 0.0
        %1083 = vmatprep.subr.mxu0 0.0
        %1084 = vmatpush1.msra.mxu0 0.0
        %1085 = vmatprep.subr.mxu0 0.0
        %1086 = vmatpush1.msra.mxu0 0.0
        %1087 = vmatprep.subr.mxu0 0.0
        %1088 = vmatpush1.msra.mxu0 0.0
        %1089 = vmatprep.mubr.f32.mxu0 0.0
        %1090 = vmatmul.mubr.f32.gmra.mrb[0].mxu0 %v1023
        %v1091 = vpop.f32.mrb[0].mxu0
        %v1092 = vadd.f32 0.0, %v1091
        %v1093 = vpop.f32.mrb[0].mxu0
        %1094 = vdwg.mxu0
        %vm1095 = vcmask 130048
        %v1096 = vsel %vm1095, %v449, 0
        %1098 = vmatprep.subr.mxu0 0.0
        %1099 = vmatpush1.msra.mxu0 %v443
        %1100 = vmatprep.subr.mxu0 0.0
        %1101 = vmatpush1.msra.mxu0 %v444
        %1102 = vmatprep.subr.mxu0 0.0
        %1103 = vmatpush1.msra.mxu0 0.0
        %1104 = vmatprep.subr.mxu0 0.0
        %1105 = vmatpush1.msra.mxu0 0.0
        %1106 = vmatprep.subr.mxu0 0.0
        %1107 = vmatpush1.msra.mxu0 0.0
        %1108 = vmatprep.subr.mxu0 0.0
        %1109 = vmatpush1.msra.mxu0 0.0
        %1110 = vmatprep.subr.mxu0 0.0
        %1111 = vmatpush1.msra.mxu0 0.0
        %1112 = vmatprep.subr.mxu0 0.0
        %1113 = vmatpush1.msra.mxu0 0.0
        %1114 = vmatprep.subr.mxu0 0.0
        %1115 = vmatpush1.msra.mxu0 0.0
        %1116 = vmatprep.subr.mxu0 0.0
        %1117 = vmatpush1.msra.mxu0 0.0
        %1118 = vmatprep.subr.mxu0 0.0
        %1119 = vmatpush1.msra.mxu0 0.0
        %1120 = vmatprep.subr.mxu0 0.0
        %1121 = vmatpush1.msra.mxu0 0.0
        %1122 = vmatprep.subr.mxu0 0.0
        %1123 = vmatpush1.msra.mxu0 0.0
        %1124 = vmatprep.subr.mxu0 0.0
        %1125 = vmatpush1.msra.mxu0 0.0
        %1126 = vmatprep.subr.mxu0 0.0
        %1127 = vmatpush1.msra.mxu0 0.0
        %1128 = vmatprep.subr.mxu0 0.0
        %1129 = vmatpush1.msra.mxu0 0.0
        %1130 = vmatprep.subr.mxu0 0.0
        %1131 = vmatpush1.msra.mxu0 0.0
        %1132 = vmatprep.subr.mxu0 0.0
        %1133 = vmatpush1.msra.mxu0 0.0
        %1134 = vmatprep.subr.mxu0 0.0
        %1135 = vmatpush1.msra.mxu0 0.0
        %1136 = vmatprep.subr.mxu0 0.0
        %1137 = vmatpush1.msra.mxu0 0.0
        %1138 = vmatprep.subr.mxu0 0.0
        %1139 = vmatpush1.msra.mxu0 0.0
        %1140 = vmatprep.subr.mxu0 0.0
        %1141 = vmatpush1.msra.mxu0 0.0
        %1142 = vmatprep.subr.mxu0 0.0
        %1143 = vmatpush1.msra.mxu0 0.0
        %1144 = vmatprep.subr.mxu0 0.0
        %1145 = vmatpush1.msra.mxu0 0.0
        %1146 = vmatprep.subr.mxu0 0.0
        %1147 = vmatpush1.msra.mxu0 0.0
        %1148 = vmatprep.subr.mxu0 0.0
        %1149 = vmatpush1.msra.mxu0 0.0
        %1150 = vmatprep.subr.mxu0 0.0
        %1151 = vmatpush1.msra.mxu0 0.0
        %1152 = vmatprep.subr.mxu0 0.0
        %1153 = vmatpush1.msra.mxu0 0.0
        %1154 = vmatprep.subr.mxu0 0.0
        %1155 = vmatpush1.msra.mxu0 0.0
        %1156 = vmatprep.subr.mxu0 0.0
        %1157 = vmatpush1.msra.mxu0 0.0
        %1158 = vmatprep.subr.mxu0 0.0
        %1159 = vmatpush1.msra.mxu0 0.0
        %1160 = vmatprep.subr.mxu0 0.0
        %1161 = vmatpush1.msra.mxu0 0.0
        %1162 = vmatprep.mubr.f32.mxu0 0.0
        %1163 = vmatmul.mubr.f32.gmra.mrb[0].mxu0 %v1096
        %v1164 = vpop.f32.mrb[0].mxu0
        %v1165 = vadd.f32 %v1092, %v1164
        %v1166 = vpop.f32.mrb[0].mxu0
        %1167 = vdwg.mxu0
        %v1169 = vlaneseq
        %v1170 = vshrl.u32 %v1169, 7
        %v1171 = vsub.s32 0, %v1170
        %v1172 = vrot.slane %v446, %v1171
        %v1174 = vadd.f32 %v1165, %v1172
        %v1175 = vsel %vm1095, %v1174, 0.0
        %1176 = vadd.xlane.f32.xlu0 %v1175
        %v1177 = vpop.xlane.xlu0 %1176
        %v1178 = vrcp.pop 16.0
        %v1179 = vmul.f32 %v1177, %v1178
        %v1180 = vmul.f32 %v1174, %v1174
        %v1181 = vsel %vm1095, %v1180, 0.0
        %1182 = vadd.xlane.f32.xlu0 %v1181
        %v1183 = vpop.xlane.xlu0 %1182
        %v1184 = vmul.f32 %v1183, %v1178
        %v1185 = vmul.f32 %v1179, %v1179
        %v1186 = vsub.f32 %v1184, %v1185
        %v1187 = vmax.f32 %v1186, 0.0
        %v1188 = vsub.f32 %v1174, %v1179
        %v1189 = vadd.f32 %v1187, 1e-05
        %v1190 = vrsqrt.pop %v1189
        %v1191 = vmul.f32 %v1188, %v1190
        %v1193 = vlaneseq
        %v1194 = vshrl.u32 %v1193, 7
        %v1195 = vsub.s32 0, %v1194
        %v1196 = vrot.slane %v447, %v1195
        %v1198 = vmul.f32 %v1191, %v1196
        %v1200 = vlaneseq
        %v1201 = vshrl.u32 %v1200, 7
        %v1202 = vsub.s32 0, %v1201
        %v1203 = vrot.slane %v448, %v1202
        %v1205 = vadd.f32 %v1198, %v1203
        %v1206 = vmul.f32 %v1205, 0.5
        %v1207 = vmul.f32 %v1205, 0.70710677
        %vm1208 = vcmp.ge.f32.partialorder %v1207, 0.0
        %v1209 = vsel %vm1208, 1.0, -1.0
        %v1210 = vand.u32 2147483647, %v1207
        %v1211 = vmul.f32 %v1210, 0.3275911
        %v1212 = vadd.f32 %v1211, 1.0
        %v1213 = vrcp.pop %v1212
        %v1214 = vmul.f32 %v1212, %v1213
        %v1215 = vsub.f32 2.0, %v1214
        %v1216 = vmul.f32 %v1213, %v1215
        %v1217 = vmul.f32 %v1216, 1.0614054
        %v1218 = vadd.f32 %v1217, -1.4531521
        %v1219 = vmul.f32 %v1216, %v1218
        %v1220 = vadd.f32 %v1219, 1.4214138
        %v1221 = vmul.f32 %v1216, %v1220
        %v1222 = vadd.f32 %v1221, -0.28449672
        %v1223 = vmul.f32 %v1216, %v1222
        %v1224 = vadd.f32 %v1223, 0.2548296
        %v1225 = vmul.f32 %v1216, %v1224
        %v1226 = vsub.f32 0.0, %v1210
        %v1227 = vmul.f32 %v1226, %v1210
        %v1228 = vmul.f32 %v1227, 1.442695
        %v1229 = vpow.pop %v1228
        %v1230 = vmul.f32 %v1225, %v1229
        %v1231 = vsub.f32 1.0, %v1230
        %v1232 = vmul.f32 %v1209, %v1231
        %v1233 = vadd.f32 %v1232, 1.0
        %v1234 = vmul.f32 %v1206, %v1233
        %1235 = vst.msk [vmem:[%s426] sm:$0xff] %vm1095, %v1234
        %s1236 = sand.u32 %s252, 1
        %s1237 = scalar_lea.sflag [#allocation4], %s1236
        %s1238 = sand.u32 %s252, 1
        %s1239 = smul.addr %s1238, 8
        %s1240 = scalar_lea.vmem [#allocation11], %s1239
        // Predicated region
        $region81: #{tpu_custom_call.1} parent=59 // pred_check
          %p1241 = pneg %p262
        $region82: #{tpu_custom_call.1} parent=59 // pred_check_branch
          %1243 = sbr.rel (%p1241) target = $region84
        $region83: #{tpu_custom_call.1} parent=59 // pred_region
          %s1245 = ssub.s32 128, 128
          %1246 = vsyncadd %s1237, %s1245
          %s1247 = smul.addr %s29, 128
          %s1248 = scalar_lea.hbm %s10, %s1247
          %s1250 = sshll.u32 %s1240, 4
          %s1251 = int_to_ptr.vmem [resolvable:$true] %s1250
          %1253 = dma.vmem_to_hbm [thread:$0]  %s1251, 128, %s1248, %s1237
        $region84: #{tpu_custom_call.1} parent=59 // pred_fallthru
          _
      $region60: #{tpu_custom_call.1} parent=5 // pred_fallthru
        _
      %p1254 = scmp.le.s32.totalorder 2, %s24
      // Predicated region
      $region85: #{tpu_custom_call.1} parent=5 // pred_check
        %p1255 = pneg %p1254
      $region86: #{tpu_custom_call.1} parent=5 // pred_check_branch
        %1257 = sbr.rel (%p1255) target = $region88
      $region87: #{tpu_custom_call.1} parent=5 // pred_region
        %s1258 = ssub.s32 %s24, 2
        // Predicated region
        $region89: #{tpu_custom_call.1} parent=87 // pred_check
          %p1259 = pneg %p268
        $region90: #{tpu_custom_call.1} parent=87 // pred_check_branch
          %1261 = sbr.rel (%p1259) target = $region92
        $region91: #{tpu_custom_call.1} parent=87 // pred_region
          %s1262 = sand.u32 %s253, 1
          %s1263 = scalar_lea.sflag [#allocation4], %s1262
          %s1264 = sand.u32 %s253, 1
          %s1265 = smul.addr %s1264, 8
          %s1266 = scalar_lea.vmem [#allocation11], %s1265
          %1267 = dma.done %s1263, 128
        $region92: #{tpu_custom_call.1} parent=87 // pred_fallthru
          _
      $region88: #{tpu_custom_call.1} parent=5 // pred_fallthru
        _
    $region6: #{tpu_custom_call.1} parent=1 // loop_footer
      %s28 = sadd.s32 1, %s24
    $region7: #{tpu_custom_call.1} parent=1 // loop_footer_branch
      %23 = sbr.rel target = $region3
    $region8: #{tpu_custom_call.1} parent=1 // loop_exit
      _
    %1268 = vsyncpa [#allocation3], 1
    %s1269 = scalar_lea.sflag [#allocation3], 1
    %1270 = vsyncpa %s1269, 1
    %1271 = vsyncpa [#allocation6], 1
    %1272 = vsyncpa [#allocation9], 1
    %1273 = vsyncpa [#allocation4], 1
    %s1274 = scalar_lea.sflag [#allocation4], 1
    %1275 = vsyncpa %s1274, 1

</llo_original>
